<compile_context>
chip_gen: v6e
topology: v6e:2x2x1
jax: 0.10.0
libtpu: 0.0.40
codegen_flags: <defaults>
</compile_context>

<pallas_src>
import functools
import math

import jax
import jax.numpy as jnp
from jax.experimental import pallas as pl
from jax.experimental.pallas import tpu as pltpu


def _gelu_exact(x):
    # PyTorch F.gelu default: exact erf-based GELU.
    return 0.5 * x * (1.0 + jax.lax.erf(x * 0.7071067811865476))


def _gelu_tanh(x):
    return jax.nn.gelu(x, approximate=True)


def star_kernel(x_ref, w13_ref, b13_ref, w2_ref, b2_ref, w3b_ref, w4_ref, b4_ref, o_ref,
                *, channels, approx_gelu):
    m, d = x_ref.shape            # (tb*C, D), bf16
    tb = m // channels
    gelu = _gelu_tanh if approx_gelu else _gelu_exact

    # Fused gen1 | gen3(x-part):  x @ [w1 | w3a] + [b1 | b3]   -> (M, 2D), f32 acc
    xw = jnp.dot(x_ref[...], w13_ref[...], preferred_element_type=jnp.float32) + b13_ref[...]
    h1 = gelu(xw[:, :d])          # gen1 + GELU
    g3x = xw[:, d:]               # x @ w3a + b3 (pre-activation; core term added later)

    # gen2 -> combined_mean  (M, d_core)
    cm = jnp.dot(h1.astype(jnp.bfloat16), w2_ref[...],
                 preferred_element_type=jnp.float32) + b2_ref[...]
    dc = cm.shape[-1]
    cm3 = cm.reshape(tb, channels, dc)          # leading-dim split, layout-free

    # softmax over the channel axis (PyTorch dim=1), then cm-weighted core per batch elem
    mx = jnp.max(cm3, axis=1, keepdims=True)
    e = jnp.exp(cm3 - mx)
    wsm = e * pl.reciprocal(jnp.sum(e, axis=1, keepdims=True), approx=True)
    core = jnp.sum(cm3 * wsm, axis=1, keepdims=True).reshape(tb, dc)   # (TB, d_core)

    # core @ w3b at M = TB (not TB*C); broadcast the (TB, D) result across channels.
    core_p = jnp.dot(core.astype(jnp.bfloat16), w3b_ref[...],
                     preferred_element_type=jnp.float32)               # (TB, D)

    g3 = g3x.reshape(tb, channels, d) + core_p.reshape(tb, 1, d)       # sublane broadcast
    h3 = gelu(g3).reshape(m, d)

    # gen4
    out = jnp.dot(h3.astype(jnp.bfloat16), w4_ref[...],
                  preferred_element_type=jnp.float32) + b4_ref[...]
    o_ref[...] = out.astype(o_ref.dtype)


def prepare_kernel_params(params):
    """Fuse gen1/gen3(x-part) weights and cast matmul weights to bf16 (biases stay f32)."""
    w13 = jnp.concatenate([params["w1"], params["w3a"]], axis=1).astype(jnp.bfloat16)
    b13 = jnp.concatenate([params["b1"], params["b3"]], axis=1).astype(jnp.float32)
    return {
        "w13": w13, "b13": b13,
        "w2": params["w2"].astype(jnp.bfloat16), "b2": params["b2"].astype(jnp.float32),
        "w3b": params["w3b"].astype(jnp.bfloat16),
        "w4": params["w4"].astype(jnp.bfloat16), "b4": params["b4"].astype(jnp.float32),
    }


def _round_up(x, m):
    return ((x + m - 1) // m) * m


def _choose_tile(B, C, D, dc, rows_per_tile, vmem_budget_bytes):
    """Pick (tb batch-elems per tile, even #tiles) against rows target & VMEM budget."""
    if B <= 1:
        return max(B, 1), 1
    tb = max(1, rows_per_tile // max(C, 1))
    # Crude per-batch-element VMEM model (last dim lane-padded to 128, I/O double-buffered).
    lp_d, lp_2d, lp_dc = (_round_up(v, 128) for v in (D, 2 * D, dc))
    per_b = C * (
        2 * 2 * lp_d                       # x block (bf16), 2 buffers
        + 2 * 4 * lp_d                     # out block (f32), 2 buffers
        + 4 * (lp_2d + 3 * lp_d + lp_dc)   # f32 temps: xw, h1, h3, out, cm
    )
    tb = min(tb, max(8, vmem_budget_bytes // max(per_b, 1)), B)
    # Even number of grid tiles so both v7x TensorCores get equal work.
    n_tiles = max(2, pl.cdiv(B, tb))
    n_tiles = 2 * pl.cdiv(n_tiles, 2)
    tb = pl.cdiv(B, n_tiles)
    # (8,128) layout: the row-block (tb*C) should be a multiple of 8 sublanes.
    tb = _round_up(tb, 8 // math.gcd(C, 8))
    return tb, n_tiles


def star_forward(x, params, *, rows_per_tile=4096, vmem_budget_bytes=28 * 1024 * 1024,
                 vmem_limit_bytes=48 * 1024 * 1024, approximate_gelu=False):
    """x: (B, C, D) float32. params: dict of (in, out) weights and (1, out) biases."""
    B, C, D = x.shape
    kp = prepare_kernel_params(params)
    dcore = kp["w2"].shape[1]

    tb, n_tiles = _choose_tile(B, C, D, dcore, rows_per_tile, vmem_budget_bytes)
    Bp = n_tiles * tb
    rows, rows_p, row_blk = B * C, Bp * C, tb * C

    # bf16 + flattened (rows, D) input: half the DMA bytes, no in-kernel x/out reshapes.
    x2 = x.reshape(rows, D).astype(jnp.bfloat16)
    if rows_p != rows:
        x2 = jnp.pad(x2, ((0, rows_p - rows), (0, 0)))

    def full(arr):
        nd = arr.ndim
        return pl.BlockSpec(arr.shape, lambda b, _nd=nd: (0,) * _nd)

    m_tot = rows_p
    flops = 2 * m_tot * D * (2 * D) + 2 * m_tot * D * dcore + 2 * Bp * dcore * D + 2 * m_tot * D * D
    transcendentals = 2 * m_tot * D + m_tot * dcore            # 2 GELUs + softmax exp
    weight_bytes = sum(int(w.size) * w.dtype.itemsize for w in kp.values())
    bytes_accessed = m_tot * D * (2 + x.dtype.itemsize) + weight_bytes

    kernel = functools.partial(star_kernel, channels=C, approx_gelu=approximate_gelu)

    out2 = pl.pallas_call(
        kernel,
        out_shape=jax.ShapeDtypeStruct((rows_p, D), x.dtype),
        grid_spec=pltpu.PrefetchScalarGridSpec(
            num_scalar_prefetch=0,
            grid=(n_tiles,),
            in_specs=[
                pl.BlockSpec((row_blk, D), lambda b: (b, 0)),   # x (bf16)
                full(kp["w13"]), full(kp["b13"]),               # fused [w1|w3a], [b1|b3]
                full(kp["w2"]), full(kp["b2"]),                 # gen2
                full(kp["w3b"]),                                # gen3 core-part rows
                full(kp["w4"]), full(kp["b4"]),                 # gen4
            ],
            out_specs=pl.BlockSpec((row_blk, D), lambda b: (b, 0)),
        ),
        compiler_params=pltpu.CompilerParams(
            dimension_semantics=("parallel",),
            vmem_limit_bytes=vmem_limit_bytes,
        ),
        cost_estimate=pl.CostEstimate(
            flops=int(flops),
            transcendentals=int(transcendentals),
            bytes_accessed=int(bytes_accessed),
        ),
    )(x2, kp["w13"], kp["b13"], kp["w2"], kp["b2"], kp["w3b"], kp["w4"], kp["b4"])

    out = out2[:rows].reshape(B, C, D) if rows_p != rows else out2.reshape(B, C, D)
    return out, None


def star_reference_exact(x, params):
    """Pure-JAX f32 reference of the eval-mode PyTorch forward."""
    h1 = _gelu_exact(x @ params["w1"] + params["b1"])
    cm = h1 @ params["w2"] + params["b2"]
    w = jax.nn.softmax(cm, axis=1)
    core = jnp.sum(cm * w, axis=1, keepdims=True)
    core_b = jnp.broadcast_to(core, (x.shape[0], x.shape[1], core.shape[-1]))
    cat = jnp.concatenate([x, core_b], axis=-1)
    w3 = jnp.concatenate([params["w3a"], params["w3b"]], axis=0)
    h3 = _gelu_exact(cat @ w3 + params["b3"])
    return h3 @ params["w4"] + params["b4"]


def star_reference_matched(x, kp):
    """Reference with the same bf16/f32 mixed precision and op order as the kernel."""
    B, C, D = x.shape
    m = B * C
    xb = x.reshape(m, D).astype(jnp.bfloat16)
    xw = jnp.dot(xb, kp["w13"], preferred_element_type=jnp.float32) + kp["b13"]
    h1 = _gelu_exact(xw[:, :D])
    g3x = xw[:, D:]
    cm = jnp.dot(h1.astype(jnp.bfloat16), kp["w2"], preferred_element_type=jnp.float32) + kp["b2"]
    dc = cm.shape[-1]
    cm3 = cm.reshape(B, C, dc)
    w = jax.nn.softmax(cm3, axis=1)
    core = jnp.sum(cm3 * w, axis=1)                                    # (B, dc)
    core_p = jnp.dot(core.astype(jnp.bfloat16), kp["w3b"], preferred_element_type=jnp.float32)
    h3 = _gelu_exact(g3x.reshape(B, C, D) + core_p[:, None, :]).reshape(m, D)
    out = jnp.dot(h3.astype(jnp.bfloat16), kp["w4"], preferred_element_type=jnp.float32) + kp["b4"]
    return out.reshape(B, C, D)


def make_params(key, d_series, d_core):
    ks = jax.random.split(key, 8)
    s = 0.05
    return {
        "w1":  jax.random.normal(ks[0], (d_series, d_series), jnp.float32) * s,
        "b1":  jax.random.normal(ks[1], (1, d_series), jnp.float32) * s,
        "w2":  jax.random.normal(ks[2], (d_series, d_core), jnp.float32) * s,
        "b2":  jax.random.normal(ks[3], (1, d_core), jnp.float32) * s,
        "w3a": jax.random.normal(ks[4], (d_series, d_series), jnp.float32) * s,
        "w3b": jax.random.normal(ks[5], (d_core, d_series), jnp.float32) * s,
        "b3":  jax.random.normal(ks[6], (1, d_series), jnp.float32) * s,
        "w4":  jax.random.normal(ks[7], (d_series, d_series), jnp.float32) * s,
        "b4":  jnp.zeros((1, d_series), jnp.float32),
    }


if __name__ == "__main__":
    B, C, d_series, d_core = 64, 8, 32, 16   # -> tb=32, 2 even grid tiles (both v7x TCs busy)
    key = jax.random.PRNGKey(0)
    kx, kparam = jax.random.split(key)
    x = jax.random.normal(kx, (B, C, d_series), jnp.float32)
    params = make_params(kparam, d_series, d_core)

    out, _ = star_forward(x, params)
    out = jax.block_until_ready(out)

    kp_fused = prepare_kernel_params(params)
    ref_matched = star_reference_matched(x, kp_fused)
    ref_exact = star_reference_exact(x, params)

    assert out.shape == (B, C, d_series)
    assert jnp.allclose(out, ref_matched, atol=5e-3, rtol=5e-3), "mismatch vs precision-matched reference"
    assert jnp.allclose(out, ref_exact, atol=3e-2, rtol=3e-2), "mismatch vs exact f32 reference"
    print("KERNEL_OK")
</pallas_src>

<mosaic_0001>
module attributes {stable_mosaic.version = 11 : i64} {
  func.func @star_kernel(%arg0: i32, %arg1: memref<256x32xbf16, #tpu.memory_space<vmem>>, %arg2: memref<32x64xbf16, #tpu.memory_space<vmem>>, %arg3: memref<1x64xf32, #tpu.memory_space<vmem>>, %arg4: memref<32x16xbf16, #tpu.memory_space<vmem>>, %arg5: memref<1x16xf32, #tpu.memory_space<vmem>>, %arg6: memref<16x32xbf16, #tpu.memory_space<vmem>>, %arg7: memref<32x32xbf16, #tpu.memory_space<vmem>>, %arg8: memref<1x32xf32, #tpu.memory_space<vmem>>, %arg9: memref<256x32xf32, #tpu.memory_space<vmem>>) attributes {dimension_semantics = [#tpu.dimension_semantics<parallel>], iteration_bounds = array<i64: 2>, scalar_prefetch = 0 : i64, scratch_operands = 0 : i64, tpu.core_type = #tpu.core_type<tc>, window_params = [{transform_indices = @transform_0, window_bounds = array<i64: 256, 32>}, {pipeline_mode = #tpu.pipeline_mode<synchronous>, transform_indices = @transform_1, window_bounds = array<i64: 32, 64>}, {pipeline_mode = #tpu.pipeline_mode<synchronous>, transform_indices = @transform_2, window_bounds = array<i64: 1, 64>}, {pipeline_mode = #tpu.pipeline_mode<synchronous>, transform_indices = @transform_3, window_bounds = array<i64: 32, 16>}, {pipeline_mode = #tpu.pipeline_mode<synchronous>, transform_indices = @transform_4, window_bounds = array<i64: 1, 16>}, {pipeline_mode = #tpu.pipeline_mode<synchronous>, transform_indices = @transform_5, window_bounds = array<i64: 16, 32>}, {pipeline_mode = #tpu.pipeline_mode<synchronous>, transform_indices = @transform_6, window_bounds = array<i64: 32, 32>}, {pipeline_mode = #tpu.pipeline_mode<synchronous>, transform_indices = @transform_7, window_bounds = array<i64: 1, 32>}, {transform_indices = @transform_8, window_bounds = array<i64: 256, 32>}]} {
    %c0 = arith.constant 0 : index
    %c0_0 = arith.constant 0 : index
    %0 = vector.load %arg1[%c0, %c0_0] : memref<256x32xbf16, #tpu.memory_space<vmem>>, vector<256x32xbf16>
    %c0_1 = arith.constant 0 : index
    %c0_2 = arith.constant 0 : index
    %1 = vector.load %arg2[%c0_1, %c0_2] : memref<32x64xbf16, #tpu.memory_space<vmem>>, vector<32x64xbf16>
    %cst = arith.constant dense<0.000000e+00> : vector<256x64xf32>
    %2 = tpu.matmul %0, %1, %cst {dimension_numbers = #tpu.dot_dimension_numbers<[1], [0], [0], [1], [0, 0, 1, 1], [], []>} : vector<256x32xbf16>, vector<32x64xbf16>, vector<256x64xf32> -> vector<256x64xf32>
    %c0_3 = arith.constant 0 : index
    %c0_4 = arith.constant 0 : index
    %3 = vector.load %arg3[%c0_3, %c0_4] : memref<1x64xf32, #tpu.memory_space<vmem>>, vector<1x64xf32>
    %4 = vector.broadcast %3 : vector<1x64xf32> to vector<256x64xf32>
    %5 = arith.addf %2, %4 : vector<256x64xf32>
    %6 = vector.extract_strided_slice %5 {offsets = [0, 0], sizes = [256, 32], strides = [1, 1]} : vector<256x64xf32> to vector<256x32xf32>
    %cst_5 = arith.constant 5.000000e-01 : f32
    %7 = vector.broadcast %cst_5 : f32 to vector<256x32xf32>
    %8 = arith.mulf %7, %6 : vector<256x32xf32>
    %cst_6 = arith.constant 0.707106769 : f32
    %9 = vector.broadcast %cst_6 : f32 to vector<256x32xf32>
    %10 = arith.mulf %6, %9 : vector<256x32xf32>
    %11 = math.erf %10 : vector<256x32xf32>
    %cst_7 = arith.constant 1.000000e+00 : f32
    %12 = vector.broadcast %cst_7 : f32 to vector<256x32xf32>
    %13 = arith.addf %12, %11 : vector<256x32xf32>
    %14 = arith.mulf %8, %13 : vector<256x32xf32>
    %15 = vector.extract_strided_slice %5 {offsets = [0, 32], sizes = [256, 32], strides = [1, 1]} : vector<256x64xf32> to vector<256x32xf32>
    %16 = arith.truncf %14 : vector<256x32xf32> to vector<256x32xbf16>
    %c0_8 = arith.constant 0 : index
    %c0_9 = arith.constant 0 : index
    %17 = vector.load %arg4[%c0_8, %c0_9] : memref<32x16xbf16, #tpu.memory_space<vmem>>, vector<32x16xbf16>
    %cst_10 = arith.constant dense<0.000000e+00> : vector<256x16xf32>
    %18 = tpu.matmul %16, %17, %cst_10 {dimension_numbers = #tpu.dot_dimension_numbers<[1], [0], [0], [1], [0, 0, 1, 1], [], []>} : vector<256x32xbf16>, vector<32x16xbf16>, vector<256x16xf32> -> vector<256x16xf32>
    %c0_11 = arith.constant 0 : index
    %c0_12 = arith.constant 0 : index
    %19 = vector.load %arg5[%c0_11, %c0_12] : memref<1x16xf32, #tpu.memory_space<vmem>>, vector<1x16xf32>
    %20 = vector.broadcast %19 : vector<1x16xf32> to vector<256x16xf32>
    %21 = arith.addf %18, %20 : vector<256x16xf32>
    %22 = vector.shape_cast %21 : vector<256x16xf32> to vector<32x8x16xf32>
    %cst_13 = arith.constant dense<0xFF800000> : vector<32x16xf32>
    %23 = vector.multi_reduction <maximumf>, %22, %cst_13 [1] : vector<32x8x16xf32> to vector<32x16xf32>
    %24 = vector.shape_cast %23 : vector<32x16xf32> to vector<32x1x16xf32>
    %25 = vector.broadcast %24 : vector<32x1x16xf32> to vector<32x8x16xf32>
    %26 = arith.subf %22, %25 : vector<32x8x16xf32>
    %27 = math.exp %26 : vector<32x8x16xf32>
    %cst_14 = arith.constant dense<0.000000e+00> : vector<32x16xf32>
    %28 = vector.multi_reduction <add>, %27, %cst_14 [1] : vector<32x8x16xf32> to vector<32x16xf32>
    %29 = vector.shape_cast %28 : vector<32x16xf32> to vector<32x1x16xf32>
    %30 = tpu.reciprocal %29 {approx = true} : vector<32x1x16xf32> -> vector<32x1x16xf32>
    %31 = vector.broadcast %30 : vector<32x1x16xf32> to vector<32x8x16xf32>
    %32 = arith.mulf %27, %31 : vector<32x8x16xf32>
    %33 = arith.mulf %22, %32 : vector<32x8x16xf32>
    %cst_15 = arith.constant dense<0.000000e+00> : vector<32x16xf32>
    %34 = vector.multi_reduction <add>, %33, %cst_15 [1] : vector<32x8x16xf32> to vector<32x16xf32>
    %35 = vector.shape_cast %34 : vector<32x16xf32> to vector<32x1x16xf32>
    %36 = vector.shape_cast %35 : vector<32x1x16xf32> to vector<32x16xf32>
    %37 = arith.truncf %36 : vector<32x16xf32> to vector<32x16xbf16>
    %c0_16 = arith.constant 0 : index
    %c0_17 = arith.constant 0 : index
    %38 = vector.load %arg6[%c0_16, %c0_17] : memref<16x32xbf16, #tpu.memory_space<vmem>>, vector<16x32xbf16>
    %cst_18 = arith.constant dense<0.000000e+00> : vector<32x32xf32>
    %39 = tpu.matmul %37, %38, %cst_18 {dimension_numbers = #tpu.dot_dimension_numbers<[1], [0], [0], [1], [0, 0, 1, 1], [], []>} : vector<32x16xbf16>, vector<16x32xbf16>, vector<32x32xf32> -> vector<32x32xf32>
    %40 = vector.shape_cast %15 : vector<256x32xf32> to vector<32x8x32xf32>
    %41 = vector.shape_cast %39 : vector<32x32xf32> to vector<32x1x32xf32>
    %42 = vector.broadcast %41 : vector<32x1x32xf32> to vector<32x8x32xf32>
    %43 = arith.addf %40, %42 : vector<32x8x32xf32>
    %cst_19 = arith.constant 5.000000e-01 : f32
    %44 = vector.broadcast %cst_19 : f32 to vector<32x8x32xf32>
    %45 = arith.mulf %44, %43 : vector<32x8x32xf32>
    %cst_20 = arith.constant 0.707106769 : f32
    %46 = vector.broadcast %cst_20 : f32 to vector<32x8x32xf32>
    %47 = arith.mulf %43, %46 : vector<32x8x32xf32>
    %48 = math.erf %47 : vector<32x8x32xf32>
    %cst_21 = arith.constant 1.000000e+00 : f32
    %49 = vector.broadcast %cst_21 : f32 to vector<32x8x32xf32>
    %50 = arith.addf %49, %48 : vector<32x8x32xf32>
    %51 = arith.mulf %45, %50 : vector<32x8x32xf32>
    %52 = vector.shape_cast %51 : vector<32x8x32xf32> to vector<256x32xf32>
    %53 = arith.truncf %52 : vector<256x32xf32> to vector<256x32xbf16>
    %c0_22 = arith.constant 0 : index
    %c0_23 = arith.constant 0 : index
    %54 = vector.load %arg7[%c0_22, %c0_23] : memref<32x32xbf16, #tpu.memory_space<vmem>>, vector<32x32xbf16>
    %cst_24 = arith.constant dense<0.000000e+00> : vector<256x32xf32>
    %55 = tpu.matmul %53, %54, %cst_24 {dimension_numbers = #tpu.dot_dimension_numbers<[1], [0], [0], [1], [0, 0, 1, 1], [], []>} : vector<256x32xbf16>, vector<32x32xbf16>, vector<256x32xf32> -> vector<256x32xf32>
    %c0_25 = arith.constant 0 : index
    %c0_26 = arith.constant 0 : index
    %56 = vector.load %arg8[%c0_25, %c0_26] : memref<1x32xf32, #tpu.memory_space<vmem>>, vector<1x32xf32>
    %57 = vector.broadcast %56 : vector<1x32xf32> to vector<256x32xf32>
    %58 = arith.addf %55, %57 : vector<256x32xf32>
    %c0_27 = arith.constant 0 : index
    %c0_28 = arith.constant 0 : index
    %59 = vector.load %arg9[%c0_27, %c0_28] : memref<256x32xf32, #tpu.memory_space<vmem>>, vector<256x32xf32>
    tpu.vector_store %arg9[%c0_27, %c0_28], %58 {strides = array<i32>} : memref<256x32xf32, #tpu.memory_space<vmem>>, vector<256x32xf32>,
    return
  }
  func.func @transform_0(%arg0: i32) -> (i32, i32) {
    %c0_i32 = arith.constant 0 : i32
    %c0_i32_0 = arith.constant 0 : i32
    return %arg0, %c0_i32 : i32, i32
  }
  func.func @transform_1(%arg0: i32) -> (i32, i32) {
    %c0_i32 = arith.constant 0 : i32
    %c0_i32_0 = arith.constant 0 : i32
    %c0_i32_1 = arith.constant 0 : i32
    return %c0_i32, %c0_i32_0 : i32, i32
  }
  func.func @transform_2(%arg0: i32) -> (i32, i32) {
    %c0_i32 = arith.constant 0 : i32
    %c0_i32_0 = arith.constant 0 : i32
    %c0_i32_1 = arith.constant 0 : i32
    return %c0_i32, %c0_i32_0 : i32, i32
  }
  func.func @transform_3(%arg0: i32) -> (i32, i32) {
    %c0_i32 = arith.constant 0 : i32
    %c0_i32_0 = arith.constant 0 : i32
    %c0_i32_1 = arith.constant 0 : i32
    return %c0_i32, %c0_i32_0 : i32, i32
  }
  func.func @transform_4(%arg0: i32) -> (i32, i32) {
    %c0_i32 = arith.constant 0 : i32
    %c0_i32_0 = arith.constant 0 : i32
    %c0_i32_1 = arith.constant 0 : i32
    return %c0_i32, %c0_i32_0 : i32, i32
  }
  func.func @transform_5(%arg0: i32) -> (i32, i32) {
    %c0_i32 = arith.constant 0 : i32
    %c0_i32_0 = arith.constant 0 : i32
    %c0_i32_1 = arith.constant 0 : i32
    return %c0_i32, %c0_i32_0 : i32, i32
  }
  func.func @transform_6(%arg0: i32) -> (i32, i32) {
    %c0_i32 = arith.constant 0 : i32
    %c0_i32_0 = arith.constant 0 : i32
    %c0_i32_1 = arith.constant 0 : i32
    return %c0_i32, %c0_i32_0 : i32, i32
  }
  func.func @transform_7(%arg0: i32) -> (i32, i32) {
    %c0_i32 = arith.constant 0 : i32
    %c0_i32_0 = arith.constant 0 : i32
    %c0_i32_1 = arith.constant 0 : i32
    return %c0_i32, %c0_i32_0 : i32, i32
  }
  func.func @transform_8(%arg0: i32) -> (i32, i32) {
    %c0_i32 = arith.constant 0 : i32
    %c0_i32_0 = arith.constant 0 : i32
    return %arg0, %c0_i32 : i32, i32
  }
}

</mosaic_0001>

<llo_original>
// kernel: tpu_custom_call.1
$region0: #{tpu_custom_call.1}
  #allocation0 [shape = 'u32[]', space=smem, size = 0x4, offset = 0x4, fixed_abs, tag = 'smem constant byte address 0x4 - core index']
  #allocation1 [shape = 'u32[144,128]{1,0:T(1,128)}', space=vmem, size = 0x12000, scoped, tag = 'internal scratch']
  %s0 = inlined_call_operand.vmem [shape: bf16[512,32], index: 0, kind: input, shape index: {}]
  %s1 = inlined_call_operand.vmem [shape: bf16[32,64], index: 1, kind: input, shape index: {}]
  %s2 = inlined_call_operand.vmem [shape: f32[1,64], index: 2, kind: input, shape index: {}]
  %s3 = inlined_call_operand.vmem [shape: bf16[32,16], index: 3, kind: input, shape index: {}]
  %s4 = inlined_call_operand.vmem [shape: f32[1,16], index: 4, kind: input, shape index: {}]
  %s5 = inlined_call_operand.vmem [shape: bf16[16,32], index: 5, kind: input, shape index: {}]
  %s6 = inlined_call_operand.vmem [shape: bf16[32,32], index: 6, kind: input, shape index: {}]
  %s7 = inlined_call_operand.vmem [shape: f32[1,32], index: 7, kind: input, shape index: {}]
  %s8 = inlined_call_operand.vmem [shape: f32[512,32], index: 8, kind: output, shape index: {}]
  %s9 = sld [smem:[#allocation0]]
  $region65: #{tpu_custom_call.1} parent=0
    _
  %s11 = ssub.s32 1, %s9
  %s12 = scalar_select 0, %s11, %s9
  loop: start=0, step=1, limit=4
  $region2: #{tpu_custom_call.1} parent=0 // loop_pre_header
    _
  $region3: #{tpu_custom_call.1} parent=0 // loop_header
    %s14 = sphi 0, %s18
    %p15 = scmp.ge.s32.totalorder %s14, 4
    %s24 = sphi 0, %s26
    %s27 = sphi 0, %s24
    %s28 = sphi 0, %s27
    %s44 = sphi 0, %s28
    %s48 = sphi 0, %s48
    %s50 = sphi 0, %s48
    %s51 = sphi 0, %s50
    %s65 = sphi 0, %s51
    %s69 = sphi 0, %s69
    %s71 = sphi 0, %s69
    %s72 = sphi 0, %s71
    %s86 = sphi 0, %s72
    %s90 = sphi 0, %s90
    %s92 = sphi 0, %s90
    %s93 = sphi 0, %s92
    %s107 = sphi 0, %s93
    %s111 = sphi 0, %s111
    %s113 = sphi 0, %s111
    %s114 = sphi 0, %s113
    %s128 = sphi 0, %s114
    %s132 = sphi 0, %s132
    %s134 = sphi 0, %s132
    %s135 = sphi 0, %s134
    %s149 = sphi 0, %s135
    %s153 = sphi 0, %s153
    %s155 = sphi 0, %s153
    %s156 = sphi 0, %s155
    %s170 = sphi 0, %s156
    %s174 = sphi 0, %s174
    %s176 = sphi 0, %s174
    %s177 = sphi 0, %s176
    %s191 = sphi 0, %s177
    %s197 = sphi 0, %s199
    %s200 = sphi 0, %s197
    %s201 = sphi 0, %s200
    %s217 = sphi 0, %s201
  $region4: #{tpu_custom_call.1} parent=0 // loop_header_branch
    %17 = sbr.rel (%p15) target = $region8
  $region5: #{tpu_custom_call.1} parent=0 // loop_body
    %s19 = ssub.s32 %s14, 1
    %s20 = ssub.s32 %s14, 2
    %s21 = sadd.s32 %s14, 1
    %s22 = ssub.s32 %s14, %s21
    %p23 = scmp.eq.s32.totalorder %s22, 0
    %s25 = sadd.s32 %s24, 1
    %s26 = scalar_select %p23, %s24, %s25
    %p29 = pneg %p23
    %p30 = scmp.eq.s32.totalorder %s14, 1
    %p31 = por %p29, %p30
    %p32 = scmp.ne.s32.totalorder %s24, %s27
    %p33 = scmp.eq.s32.totalorder %s14, 0
    %p34 = por %p32, %p33
    %p35 = scmp.ne.s32.totalorder %s24, %s27
    %p36 = scmp.eq.s32.totalorder %s19, 1
    %p37 = por %p35, %p36
    %p38 = scmp.ne.s32.totalorder %s27, %s28
    %p39 = scmp.eq.s32.totalorder %s19, 0
    %p40 = por %p38, %p39
    %p41 = scmp.ne.s32.totalorder %s27, %s28
    %p42 = scmp.eq.s32.totalorder %s20, 1
    %p43 = por %p41, %p42
    %p45 = scmp.ne.s32.totalorder %s28, %s44
    %p46 = scmp.eq.s32.totalorder %s20, 0
    %p47 = por %p45, %p46
    %s49 = sadd.s32 %s48, 1
    %p52 = scmp.eq.s32.totalorder %s14, 1
    %p53 = scmp.ne.s32.totalorder %s48, %s50
    %p54 = scmp.eq.s32.totalorder %s14, 0
    %p55 = por %p53, %p54
    %p56 = scmp.ne.s32.totalorder %s48, %s50
    %p57 = scmp.eq.s32.totalorder %s19, 1
    %p58 = por %p56, %p57
    %p59 = scmp.ne.s32.totalorder %s50, %s51
    %p60 = scmp.eq.s32.totalorder %s19, 0
    %p61 = por %p59, %p60
    %p62 = scmp.ne.s32.totalorder %s50, %s51
    %p63 = scmp.eq.s32.totalorder %s20, 1
    %p64 = por %p62, %p63
    %p66 = scmp.ne.s32.totalorder %s51, %s65
    %p67 = scmp.eq.s32.totalorder %s20, 0
    %p68 = por %p66, %p67
    %s70 = sadd.s32 %s69, 1
    %p73 = scmp.eq.s32.totalorder %s14, 1
    %p74 = scmp.ne.s32.totalorder %s69, %s71
    %p75 = scmp.eq.s32.totalorder %s14, 0
    %p76 = por %p74, %p75
    %p77 = scmp.ne.s32.totalorder %s69, %s71
    %p78 = scmp.eq.s32.totalorder %s19, 1
    %p79 = por %p77, %p78
    %p80 = scmp.ne.s32.totalorder %s71, %s72
    %p81 = scmp.eq.s32.totalorder %s19, 0
    %p82 = por %p80, %p81
    %p83 = scmp.ne.s32.totalorder %s71, %s72
    %p84 = scmp.eq.s32.totalorder %s20, 1
    %p85 = por %p83, %p84
    %p87 = scmp.ne.s32.totalorder %s72, %s86
    %p88 = scmp.eq.s32.totalorder %s20, 0
    %p89 = por %p87, %p88
    %s91 = sadd.s32 %s90, 1
    %p94 = scmp.eq.s32.totalorder %s14, 1
    %p95 = scmp.ne.s32.totalorder %s90, %s92
    %p96 = scmp.eq.s32.totalorder %s14, 0
    %p97 = por %p95, %p96
    %p98 = scmp.ne.s32.totalorder %s90, %s92
    %p99 = scmp.eq.s32.totalorder %s19, 1
    %p100 = por %p98, %p99
    %p101 = scmp.ne.s32.totalorder %s92, %s93
    %p102 = scmp.eq.s32.totalorder %s19, 0
    %p103 = por %p101, %p102
    %p104 = scmp.ne.s32.totalorder %s92, %s93
    %p105 = scmp.eq.s32.totalorder %s20, 1
    %p106 = por %p104, %p105
    %p108 = scmp.ne.s32.totalorder %s93, %s107
    %p109 = scmp.eq.s32.totalorder %s20, 0
    %p110 = por %p108, %p109
    %s112 = sadd.s32 %s111, 1
    %p115 = scmp.eq.s32.totalorder %s14, 1
    %p116 = scmp.ne.s32.totalorder %s111, %s113
    %p117 = scmp.eq.s32.totalorder %s14, 0
    %p118 = por %p116, %p117
    %p119 = scmp.ne.s32.totalorder %s111, %s113
    %p120 = scmp.eq.s32.totalorder %s19, 1
    %p121 = por %p119, %p120
    %p122 = scmp.ne.s32.totalorder %s113, %s114
    %p123 = scmp.eq.s32.totalorder %s19, 0
    %p124 = por %p122, %p123
    %p125 = scmp.ne.s32.totalorder %s113, %s114
    %p126 = scmp.eq.s32.totalorder %s20, 1
    %p127 = por %p125, %p126
    %p129 = scmp.ne.s32.totalorder %s114, %s128
    %p130 = scmp.eq.s32.totalorder %s20, 0
    %p131 = por %p129, %p130
    %s133 = sadd.s32 %s132, 1
    %p136 = scmp.eq.s32.totalorder %s14, 1
    %p137 = scmp.ne.s32.totalorder %s132, %s134
    %p138 = scmp.eq.s32.totalorder %s14, 0
    %p139 = por %p137, %p138
    %p140 = scmp.ne.s32.totalorder %s132, %s134
    %p141 = scmp.eq.s32.totalorder %s19, 1
    %p142 = por %p140, %p141
    %p143 = scmp.ne.s32.totalorder %s134, %s135
    %p144 = scmp.eq.s32.totalorder %s19, 0
    %p145 = por %p143, %p144
    %p146 = scmp.ne.s32.totalorder %s134, %s135
    %p147 = scmp.eq.s32.totalorder %s20, 1
    %p148 = por %p146, %p147
    %p150 = scmp.ne.s32.totalorder %s135, %s149
    %p151 = scmp.eq.s32.totalorder %s20, 0
    %p152 = por %p150, %p151
    %s154 = sadd.s32 %s153, 1
    %p157 = scmp.eq.s32.totalorder %s14, 1
    %p158 = scmp.ne.s32.totalorder %s153, %s155
    %p159 = scmp.eq.s32.totalorder %s14, 0
    %p160 = por %p158, %p159
    %p161 = scmp.ne.s32.totalorder %s153, %s155
    %p162 = scmp.eq.s32.totalorder %s19, 1
    %p163 = por %p161, %p162
    %p164 = scmp.ne.s32.totalorder %s155, %s156
    %p165 = scmp.eq.s32.totalorder %s19, 0
    %p166 = por %p164, %p165
    %p167 = scmp.ne.s32.totalorder %s155, %s156
    %p168 = scmp.eq.s32.totalorder %s20, 1
    %p169 = por %p167, %p168
    %p171 = scmp.ne.s32.totalorder %s156, %s170
    %p172 = scmp.eq.s32.totalorder %s20, 0
    %p173 = por %p171, %p172
    %s175 = sadd.s32 %s174, 1
    %p178 = scmp.eq.s32.totalorder %s14, 1
    %p179 = scmp.ne.s32.totalorder %s174, %s176
    %p180 = scmp.eq.s32.totalorder %s14, 0
    %p181 = por %p179, %p180
    %p182 = scmp.ne.s32.totalorder %s174, %s176
    %p183 = scmp.eq.s32.totalorder %s19, 1
    %p184 = por %p182, %p183
    %p185 = scmp.ne.s32.totalorder %s176, %s177
    %p186 = scmp.eq.s32.totalorder %s19, 0
    %p187 = por %p185, %p186
    %p188 = scmp.ne.s32.totalorder %s176, %s177
    %p189 = scmp.eq.s32.totalorder %s20, 1
    %p190 = por %p188, %p189
    %p192 = scmp.ne.s32.totalorder %s177, %s191
    %p193 = scmp.eq.s32.totalorder %s20, 0
    %p194 = por %p192, %p193
    %s195 = ssub.s32 %s14, %s21
    %p196 = scmp.eq.s32.totalorder %s195, 0
    %s198 = sadd.s32 %s197, 1
    %s199 = scalar_select %p196, %s197, %s198
    %p202 = pneg %p196
    %p203 = scmp.eq.s32.totalorder %s14, 1
    %p204 = por %p202, %p203
    %p205 = scmp.ne.s32.totalorder %s197, %s200
    %p206 = scmp.eq.s32.totalorder %s14, 0
    %p207 = por %p205, %p206
    %p208 = scmp.ne.s32.totalorder %s197, %s200
    %p209 = scmp.eq.s32.totalorder %s19, 1
    %p210 = por %p208, %p209
    %p211 = scmp.ne.s32.totalorder %s200, %s201
    %p212 = scmp.eq.s32.totalorder %s19, 0
    %p213 = por %p211, %p212
    %p214 = scmp.ne.s32.totalorder %s200, %s201
    %p215 = scmp.eq.s32.totalorder %s20, 1
    %p216 = por %p214, %p215
    %p218 = scmp.ne.s32.totalorder %s201, %s217
    %p219 = scmp.eq.s32.totalorder %s20, 0
    %p220 = por %p218, %p219
    %p221 = scmp.le.s32.totalorder 1, %s14
    %p222 = scmp.lt.s32.totalorder %s14, 3
    %p223 = pnand %p221, %p222
    %p224 = pneg %p223
    // Predicated region
    $region9: #{tpu_custom_call.1} parent=5 // pred_check
      _
    $region10: #{tpu_custom_call.1} parent=5 // pred_check_branch
      %226 = sbr.rel (%p223) target = $region12
    $region11: #{tpu_custom_call.1} parent=5 // pred_region
      %s227 = ssub.s32 %s14, 1
      // Predicated region
      $region13: #{tpu_custom_call.1} parent=11 // pred_check
        %p228 = pneg %p61
      $region14: #{tpu_custom_call.1} parent=11 // pred_check_branch
        %230 = sbr.rel (%p228) target = $region16
      $region15: #{tpu_custom_call.1} parent=11 // pred_region
        _
      $region16: #{tpu_custom_call.1} parent=11 // pred_fallthru
        _
      // Predicated region
      $region17: #{tpu_custom_call.1} parent=11 // pred_check
        %p231 = pneg %p82
      $region18: #{tpu_custom_call.1} parent=11 // pred_check_branch
        %233 = sbr.rel (%p231) target = $region20
      $region19: #{tpu_custom_call.1} parent=11 // pred_region
        _
      $region20: #{tpu_custom_call.1} parent=11 // pred_fallthru
        _
      // Predicated region
      $region21: #{tpu_custom_call.1} parent=11 // pred_check
        %p234 = pneg %p103
      $region22: #{tpu_custom_call.1} parent=11 // pred_check_branch
        %236 = sbr.rel (%p234) target = $region24
      $region23: #{tpu_custom_call.1} parent=11 // pred_region
        _
      $region24: #{tpu_custom_call.1} parent=11 // pred_fallthru
        _
      // Predicated region
      $region25: #{tpu_custom_call.1} parent=11 // pred_check
        %p237 = pneg %p124
      $region26: #{tpu_custom_call.1} parent=11 // pred_check_branch
        %239 = sbr.rel (%p237) target = $region28
      $region27: #{tpu_custom_call.1} parent=11 // pred_region
        _
      $region28: #{tpu_custom_call.1} parent=11 // pred_fallthru
        _
      // Predicated region
      $region29: #{tpu_custom_call.1} parent=11 // pred_check
        %p240 = pneg %p145
      $region30: #{tpu_custom_call.1} parent=11 // pred_check_branch
        %242 = sbr.rel (%p240) target = $region32
      $region31: #{tpu_custom_call.1} parent=11 // pred_region
        _
      $region32: #{tpu_custom_call.1} parent=11 // pred_fallthru
        _
      // Predicated region
      $region33: #{tpu_custom_call.1} parent=11 // pred_check
        %p243 = pneg %p166
      $region34: #{tpu_custom_call.1} parent=11 // pred_check_branch
        %245 = sbr.rel (%p243) target = $region36
      $region35: #{tpu_custom_call.1} parent=11 // pred_region
        _
      $region36: #{tpu_custom_call.1} parent=11 // pred_fallthru
        _
      // Predicated region
      $region37: #{tpu_custom_call.1} parent=11 // pred_check
        %p246 = pneg %p187
      $region38: #{tpu_custom_call.1} parent=11 // pred_check_branch
        %248 = sbr.rel (%p246) target = $region40
      $region39: #{tpu_custom_call.1} parent=11 // pred_region
        _
      $region40: #{tpu_custom_call.1} parent=11 // pred_fallthru
        _
    $region12: #{tpu_custom_call.1} parent=5 // pred_fallthru
      _
    %p249 = scmp.lt.s32.totalorder %s14, 2
    // Predicated region
    $region41: #{tpu_custom_call.1} parent=5 // pred_check
      %p250 = pneg %p249
    $region42: #{tpu_custom_call.1} parent=5 // pred_check_branch
      %252 = sbr.rel (%p250) target = $region44
    $region43: #{tpu_custom_call.1} parent=5 // pred_region
      // Predicated region
      $region45: #{tpu_custom_call.1} parent=43 // pred_check
        %p253 = pneg %p34
      $region46: #{tpu_custom_call.1} parent=43 // pred_check_branch
        %255 = sbr.rel (%p253) target = $region48
      $region47: #{tpu_custom_call.1} parent=43 // pred_region
        %s256 = smul.u32 32, %s14
        %p257 = scmp.lt.s32.totalorder %s256, 63
        %s258 = scalar_select %p257, %s256, 63
        %s259 = smul.addr %s258, 4
        %s260 = scalar_lea.vmem %s0, %s259
        %s261 = smul.u32 32, %s14
      $region48: #{tpu_custom_call.1} parent=43 // pred_fallthru
        _
    $region44: #{tpu_custom_call.1} parent=5 // pred_fallthru
      _
    %p262 = scmp.le.s32.totalorder 1, %s14
    %p263 = scmp.lt.s32.totalorder %s14, 3
    %p264 = pnand %p262, %p263
    %p265 = pneg %p264
    // Predicated region
    $region49: #{tpu_custom_call.1} parent=5 // pred_check
      _
    $region50: #{tpu_custom_call.1} parent=5 // pred_check_branch
      %267 = sbr.rel (%p264) target = $region52
    $region51: #{tpu_custom_call.1} parent=5 // pred_region
      %s268 = ssub.s32 %s14, 1
      %s269 = smul.u32 32, %s19
      %p270 = scmp.lt.s32.totalorder %s269, 63
      %s271 = scalar_select %p270, %s269, 63
      %s272 = smul.addr %s271, 4
      %s273 = scalar_lea.vmem %s0, %s272
      %p274 = pneg %p40
      %p275 = pneg %p37
      %p276 = pneg %p61
      %p277 = pneg %p58
      %p278 = pneg %p82
      %p279 = pneg %p79
      %p280 = pneg %p103
      %p281 = pneg %p100
      %p282 = pneg %p124
      %p283 = pneg %p121
      %p284 = pneg %p145
      %p285 = pneg %p142
      %p286 = pneg %p166
      %p287 = pneg %p163
      %p288 = pneg %p187
      %p289 = pneg %p184
      %p290 = pneg %p213
      %p291 = pneg %p210
      %s292 = smul.u32 32, %s19
      %p293 = scmp.lt.s32.totalorder %s292, 63
      %s294 = scalar_select %p293, %s292, 63
      %s295 = smul.addr %s294, 8
      %s296 = scalar_lea.vmem %s8, %s295
      %s297 = smul.u32 32, %s19
      %p298 = scmp.lt.s32.totalorder %s297, 63
      %s299 = scalar_select %p298, %s297, 63
      %s300 = smul.addr %s299, 4
      %s301 = scalar_lea.vmem %s0, %s300
      %s302 = smul.u32 32, %s19
      %s303 = smul.u32 32, %s19
      %p304 = scmp.lt.s32.totalorder %s303, 63
      %s305 = scalar_select %p304, %s303, 63
      %s306 = smul.addr %s305, 8
      %s307 = scalar_lea.vmem %s8, %s306
      %s308 = smul.u32 32, %s19
      %v310 = vld [vmem:[%s301] sm:$0xf]
      %v311 = vld [vmem:[%s301 + $0x4] sm:$0xf]
      %v312 = vld [vmem:[%s301 + $0x8] sm:$0xf]
      %v313 = vld [vmem:[%s301 + $0xc] sm:$0xf]
      %v314 = vld [vmem:[%s301 + $0x10] sm:$0xf]
      %v315 = vld [vmem:[%s301 + $0x14] sm:$0xf]
      %v316 = vld [vmem:[%s301 + $0x18] sm:$0xf]
      %v317 = vld [vmem:[%s301 + $0x1c] sm:$0xf]
      %v318 = vld [vmem:[%s301 + $0x20] sm:$0xf]
      %v319 = vld [vmem:[%s301 + $0x24] sm:$0xf]
      %v320 = vld [vmem:[%s301 + $0x28] sm:$0xf]
      %v321 = vld [vmem:[%s301 + $0x2c] sm:$0xf]
      %v322 = vld [vmem:[%s301 + $0x30] sm:$0xf]
      %v323 = vld [vmem:[%s301 + $0x34] sm:$0xf]
      %v324 = vld [vmem:[%s301 + $0x38] sm:$0xf]
      %v325 = vld [vmem:[%s301 + $0x3c] sm:$0xf]
      %v326 = vld [vmem:[%s301 + $0x40] sm:$0xf]
      %v327 = vld [vmem:[%s301 + $0x44] sm:$0xf]
      %v328 = vld [vmem:[%s301 + $0x48] sm:$0xf]
      %v329 = vld [vmem:[%s301 + $0x4c] sm:$0xf]
      %v330 = vld [vmem:[%s301 + $0x50] sm:$0xf]
      %v331 = vld [vmem:[%s301 + $0x54] sm:$0xf]
      %v332 = vld [vmem:[%s301 + $0x58] sm:$0xf]
      %v333 = vld [vmem:[%s301 + $0x5c] sm:$0xf]
      %v334 = vld [vmem:[%s301 + $0x60] sm:$0xf]
      %v335 = vld [vmem:[%s301 + $0x64] sm:$0xf]
      %v336 = vld [vmem:[%s301 + $0x68] sm:$0xf]
      %v337 = vld [vmem:[%s301 + $0x6c] sm:$0xf]
      %v338 = vld [vmem:[%s301 + $0x70] sm:$0xf]
      %v339 = vld [vmem:[%s301 + $0x74] sm:$0xf]
      %v340 = vld [vmem:[%s301 + $0x78] sm:$0xf]
      %v341 = vld [vmem:[%s301 + $0x7c] sm:$0xf]
      %v342 = vld [vmem:[%s1] sm:$0xf]
      %v343 = vld [vmem:[%s1 + $0x4] sm:$0xf]
      %v344 = vld [vmem:[%s1 + $0x8] sm:$0xf]
      %v345 = vld [vmem:[%s1 + $0xc] sm:$0xf]
      %v346 = vld [vmem:[%s2] sm:$0x1]
      %v348 = vlaneseq
      %v349 = vshrl.u32 %v348, 7
      %v350 = vsub.s32 0, %v349
      %v351 = vrot.slane %v346, %v350
      %v385 = vunpack.c.l.b16 %v310
      %v386 = vunpack.c.l.b16 %v311
      %v387 = vunpack.c.l.b16 %v312
      %v388 = vunpack.c.l.b16 %v313
      %v389 = vunpack.c.l.b16 %v314
      %v390 = vunpack.c.l.b16 %v315
      %v391 = vunpack.c.l.b16 %v316
      %v392 = vunpack.c.l.b16 %v317
      %v393 = vunpack.c.l.b16 %v318
      %v394 = vunpack.c.l.b16 %v319
      %v395 = vunpack.c.l.b16 %v320
      %v396 = vunpack.c.l.b16 %v321
      %v397 = vunpack.c.l.b16 %v322
      %v398 = vunpack.c.l.b16 %v323
      %v399 = vunpack.c.l.b16 %v324
      %v400 = vunpack.c.l.b16 %v325
      %v401 = vunpack.c.l.b16 %v326
      %v402 = vunpack.c.l.b16 %v327
      %v403 = vunpack.c.l.b16 %v328
      %v404 = vunpack.c.l.b16 %v329
      %v405 = vunpack.c.l.b16 %v330
      %v406 = vunpack.c.l.b16 %v331
      %v407 = vunpack.c.l.b16 %v332
      %v408 = vunpack.c.l.b16 %v333
      %v409 = vunpack.c.l.b16 %v334
      %v410 = vunpack.c.l.b16 %v335
      %v411 = vunpack.c.l.b16 %v336
      %v412 = vunpack.c.l.b16 %v337
      %v413 = vunpack.c.l.b16 %v338
      %v414 = vunpack.c.l.b16 %v339
      %v415 = vunpack.c.l.b16 %v340
      %v416 = vunpack.c.l.b16 %v341
      %v417 = vpack.c.b16 %v386, %v385
      %v418 = vpack.c.b16 %v388, %v387
      %v419 = vpack.c.b16 %v390, %v389
      %v420 = vpack.c.b16 %v392, %v391
      %v421 = vpack.c.b16 %v394, %v393
      %v422 = vpack.c.b16 %v396, %v395
      %v423 = vpack.c.b16 %v398, %v397
      %v424 = vpack.c.b16 %v400, %v399
      %v425 = vpack.c.b16 %v402, %v401
      %v426 = vpack.c.b16 %v404, %v403
      %v427 = vpack.c.b16 %v406, %v405
      %v428 = vpack.c.b16 %v408, %v407
      %v429 = vpack.c.b16 %v410, %v409
      %v430 = vpack.c.b16 %v412, %v411
      %v431 = vpack.c.b16 %v414, %v413
      %v432 = vpack.c.b16 %v416, %v415
      %v437 = vunpack.c.l.b16 %v342
      %v438 = vunpack.c.l.b16 %v343
      %v439 = vunpack.c.l.b16 %v344
      %v440 = vunpack.c.l.b16 %v345
      %v441 = vpack.c.b16 %v438, %v437
      %v442 = vpack.c.b16 %v440, %v439
      %vm445 = vcmask 261120
      %v447 = vsel %vm445, %v417, 0
      %v450 = vsel %vm445, %v418, 0
      %v453 = vsel %vm445, %v419, 0
      %v456 = vsel %vm445, %v420, 0
      %v459 = vsel %vm445, %v421, 0
      %v462 = vsel %vm445, %v422, 0
      %v465 = vsel %vm445, %v423, 0
      %v468 = vsel %vm445, %v424, 0
      %v471 = vsel %vm445, %v425, 0
      %v474 = vsel %vm445, %v426, 0
      %v477 = vsel %vm445, %v427, 0
      %v480 = vsel %vm445, %v428, 0
      %v483 = vsel %vm445, %v429, 0
      %v486 = vsel %vm445, %v430, 0
      %v489 = vsel %vm445, %v431, 0
      %v492 = vsel %vm445, %v432, 0
      %494 = vmatprep.subr.bf16.mxu0 0
      %495 = vmatpush1.bf16.msra.mxu0 0
      %496 = vmatprep.subr.bf16.mxu0 0
      %497 = vmatpush1.bf16.msra.mxu0 0
      %498 = vmatprep.subr.bf16.mxu0 0
      %499 = vmatpush1.bf16.msra.mxu0 0
      %500 = vmatprep.subr.bf16.mxu0 0
      %501 = vmatpush1.bf16.msra.mxu0 0
      %502 = vmatprep.subr.bf16.mxu0 0
      %503 = vmatpush1.bf16.msra.mxu0 0
      %504 = vmatprep.subr.bf16.mxu0 0
      %505 = vmatpush1.bf16.msra.mxu0 0
      %506 = vmatprep.subr.bf16.mxu0 0
      %507 = vmatpush1.bf16.msra.mxu0 %v442
      %508 = vmatprep.subr.bf16.mxu0 0
      %509 = vmatpush1.bf16.msra.mxu0 %v441
      %510 = vmatprep.subr.bf16.mxu0 0
      %511 = vmatpush2.bf16.msra.mxu0 0
      %512 = vmatprep.subr.bf16.mxu0 0
      %513 = vmatpush2.bf16.msra.mxu0 0
      %514 = vmatprep.subr.bf16.mxu0 0
      %515 = vmatpush2.bf16.msra.mxu0 0
      %516 = vmatprep.subr.bf16.mxu0 0
      %517 = vmatpush2.bf16.msra.mxu0 0
      %518 = vmatprep.subr.bf16.mxu0 0
      %519 = vmatpush2.bf16.msra.mxu0 0
      %520 = vmatprep.subr.bf16.mxu0 0
      %521 = vmatpush2.bf16.msra.mxu0 0
      %522 = vmatprep.subr.bf16.mxu0 0
      %523 = vmatpush2.bf16.msra.mxu0 0
      %524 = vmatprep.subr.bf16.mxu0 0
      %525 = vmatpush2.bf16.msra.mxu0 0
      %526 = vmatprep.mubr.bf16.mxu0 0
      %527 = vmatmul.mubr.bf16.gmra.mxu0 %v447
      %v528 = vpop.f32.mrf.mxu0
      %v529 = vadd.f32 %v351, %v528
      %v530 = vpop.f32.mrf.mxu0
      %v531 = vpop.f32.mrf.mxu0
      %v532 = vadd.f32 %v351, %v531
      %v533 = vpop.f32.mrf.mxu0
      %534 = vmatprep.mubr.bf16.mxu0 0
      %535 = vmatmul.mubr.bf16.gmra.mxu0 %v450
      %v536 = vpop.f32.mrf.mxu0
      %v537 = vadd.f32 %v351, %v536
      %v538 = vpop.f32.mrf.mxu0
      %v539 = vpop.f32.mrf.mxu0
      %v540 = vadd.f32 %v351, %v539
      %v541 = vpop.f32.mrf.mxu0
      %542 = vmatprep.mubr.bf16.mxu0 0
      %543 = vmatmul.mubr.bf16.gmra.mxu0 %v453
      %v544 = vpop.f32.mrf.mxu0
      %v545 = vadd.f32 %v351, %v544
      %v546 = vpop.f32.mrf.mxu0
      %v547 = vpop.f32.mrf.mxu0
      %v548 = vadd.f32 %v351, %v547
      %v549 = vpop.f32.mrf.mxu0
      %550 = vmatprep.mubr.bf16.mxu0 0
      %551 = vmatmul.mubr.bf16.gmra.mxu0 %v456
      %v552 = vpop.f32.mrf.mxu0
      %v553 = vadd.f32 %v351, %v552
      %v554 = vpop.f32.mrf.mxu0
      %v555 = vpop.f32.mrf.mxu0
      %v556 = vadd.f32 %v351, %v555
      %v557 = vpop.f32.mrf.mxu0
      %558 = vmatprep.mubr.bf16.mxu0 0
      %559 = vmatmul.mubr.bf16.gmra.mxu0 %v459
      %v560 = vpop.f32.mrf.mxu0
      %v561 = vadd.f32 %v351, %v560
      %v562 = vpop.f32.mrf.mxu0
      %v563 = vpop.f32.mrf.mxu0
      %v564 = vadd.f32 %v351, %v563
      %v565 = vpop.f32.mrf.mxu0
      %566 = vmatprep.mubr.bf16.mxu0 0
      %567 = vmatmul.mubr.bf16.gmra.mxu0 %v462
      %v568 = vpop.f32.mrf.mxu0
      %v569 = vadd.f32 %v351, %v568
      %v570 = vpop.f32.mrf.mxu0
      %v571 = vpop.f32.mrf.mxu0
      %v572 = vadd.f32 %v351, %v571
      %v573 = vpop.f32.mrf.mxu0
      %574 = vmatprep.mubr.bf16.mxu0 0
      %575 = vmatmul.mubr.bf16.gmra.mxu0 %v465
      %v576 = vpop.f32.mrf.mxu0
      %v577 = vadd.f32 %v351, %v576
      %v578 = vpop.f32.mrf.mxu0
      %v579 = vpop.f32.mrf.mxu0
      %v580 = vadd.f32 %v351, %v579
      %v581 = vpop.f32.mrf.mxu0
      %582 = vmatprep.mubr.bf16.mxu0 0
      %583 = vmatmul.mubr.bf16.gmra.mxu0 %v468
      %v584 = vpop.f32.mrf.mxu0
      %v585 = vadd.f32 %v351, %v584
      %v586 = vpop.f32.mrf.mxu0
      %v587 = vpop.f32.mrf.mxu0
      %v588 = vadd.f32 %v351, %v587
      %v589 = vpop.f32.mrf.mxu0
      %590 = vmatprep.mubr.bf16.mxu0 0
      %591 = vmatmul.mubr.bf16.gmra.mxu0 %v471
      %v592 = vpop.f32.mrf.mxu0
      %v593 = vadd.f32 %v351, %v592
      %v594 = vpop.f32.mrf.mxu0
      %v595 = vpop.f32.mrf.mxu0
      %v596 = vadd.f32 %v351, %v595
      %v597 = vpop.f32.mrf.mxu0
      %598 = vmatprep.mubr.bf16.mxu0 0
      %599 = vmatmul.mubr.bf16.gmra.mxu0 %v474
      %v600 = vpop.f32.mrf.mxu0
      %v601 = vadd.f32 %v351, %v600
      %v602 = vpop.f32.mrf.mxu0
      %v603 = vpop.f32.mrf.mxu0
      %v604 = vadd.f32 %v351, %v603
      %v605 = vpop.f32.mrf.mxu0
      %606 = vmatprep.mubr.bf16.mxu0 0
      %607 = vmatmul.mubr.bf16.gmra.mxu0 %v477
      %v608 = vpop.f32.mrf.mxu0
      %v609 = vadd.f32 %v351, %v608
      %v610 = vpop.f32.mrf.mxu0
      %v611 = vpop.f32.mrf.mxu0
      %v612 = vadd.f32 %v351, %v611
      %v613 = vpop.f32.mrf.mxu0
      %614 = vmatprep.mubr.bf16.mxu0 0
      %615 = vmatmul.mubr.bf16.gmra.mxu0 %v480
      %v616 = vpop.f32.mrf.mxu0
      %v617 = vadd.f32 %v351, %v616
      %v618 = vpop.f32.mrf.mxu0
      %v619 = vpop.f32.mrf.mxu0
      %v620 = vadd.f32 %v351, %v619
      %v621 = vpop.f32.mrf.mxu0
      %622 = vmatprep.mubr.bf16.mxu0 0
      %623 = vmatmul.mubr.bf16.gmra.mxu0 %v483
      %v624 = vpop.f32.mrf.mxu0
      %v625 = vadd.f32 %v351, %v624
      %v626 = vpop.f32.mrf.mxu0
      %v627 = vpop.f32.mrf.mxu0
      %v628 = vadd.f32 %v351, %v627
      %v629 = vpop.f32.mrf.mxu0
      %630 = vmatprep.mubr.bf16.mxu0 0
      %631 = vmatmul.mubr.bf16.gmra.mxu0 %v486
      %v632 = vpop.f32.mrf.mxu0
      %v633 = vadd.f32 %v351, %v632
      %v634 = vpop.f32.mrf.mxu0
      %v635 = vpop.f32.mrf.mxu0
      %v636 = vadd.f32 %v351, %v635
      %v637 = vpop.f32.mrf.mxu0
      %638 = vmatprep.mubr.bf16.mxu0 0
      %639 = vmatmul.mubr.bf16.gmra.mxu0 %v489
      %v640 = vpop.f32.mrf.mxu0
      %v641 = vadd.f32 %v351, %v640
      %v642 = vpop.f32.mrf.mxu0
      %v643 = vpop.f32.mrf.mxu0
      %v644 = vadd.f32 %v351, %v643
      %v645 = vpop.f32.mrf.mxu0
      %646 = vmatprep.mubr.bf16.mxu0 0
      %647 = vmatmul.mubr.bf16.gmra.mxu0 %v492
      %v648 = vpop.f32.mrf.mxu0
      %v649 = vadd.f32 %v351, %v648
      %v650 = vpop.f32.mrf.mxu0
      %v651 = vpop.f32.mrf.mxu0
      %v652 = vadd.f32 %v351, %v651
      %v653 = vpop.f32.mrf.mxu0
      %654 = vdwg.mxu0
      %v655 = vmul.f32 %v529, 0.5
      %v656 = vmul.f32 %v532, 0.5
      %v657 = vmul.f32 %v537, 0.5
      %v658 = vmul.f32 %v540, 0.5
      %v659 = vmul.f32 %v545, 0.5
      %v660 = vmul.f32 %v548, 0.5
      %v661 = vmul.f32 %v553, 0.5
      %v662 = vmul.f32 %v556, 0.5
      %v663 = vmul.f32 %v561, 0.5
      %v664 = vmul.f32 %v564, 0.5
      %v665 = vmul.f32 %v569, 0.5
      %v666 = vmul.f32 %v572, 0.5
      %v667 = vmul.f32 %v577, 0.5
      %v668 = vmul.f32 %v580, 0.5
      %v669 = vmul.f32 %v585, 0.5
      %v670 = vmul.f32 %v588, 0.5
      %v671 = vmul.f32 %v593, 0.5
      %v672 = vmul.f32 %v596, 0.5
      %v673 = vmul.f32 %v601, 0.5
      %v674 = vmul.f32 %v604, 0.5
      %v675 = vmul.f32 %v609, 0.5
      %v676 = vmul.f32 %v612, 0.5
      %v677 = vmul.f32 %v617, 0.5
      %v678 = vmul.f32 %v620, 0.5
      %v679 = vmul.f32 %v625, 0.5
      %v680 = vmul.f32 %v628, 0.5
      %v681 = vmul.f32 %v633, 0.5
      %v682 = vmul.f32 %v636, 0.5
      %v683 = vmul.f32 %v641, 0.5
      %v684 = vmul.f32 %v644, 0.5
      %v685 = vmul.f32 %v649, 0.5
      %v686 = vmul.f32 %v652, 0.5
      %v687 = vmul.f32 %v529, 0.70710677
      %v688 = vmul.f32 %v532, 0.70710677
      %v689 = vmul.f32 %v537, 0.70710677
      %v690 = vmul.f32 %v540, 0.70710677
      %v691 = vmul.f32 %v545, 0.70710677
      %v692 = vmul.f32 %v548, 0.70710677
      %v693 = vmul.f32 %v553, 0.70710677
      %v694 = vmul.f32 %v556, 0.70710677
      %v695 = vmul.f32 %v561, 0.70710677
      %v696 = vmul.f32 %v564, 0.70710677
      %v697 = vmul.f32 %v569, 0.70710677
      %v698 = vmul.f32 %v572, 0.70710677
      %v699 = vmul.f32 %v577, 0.70710677
      %v700 = vmul.f32 %v580, 0.70710677
      %v701 = vmul.f32 %v585, 0.70710677
      %v702 = vmul.f32 %v588, 0.70710677
      %v703 = vmul.f32 %v593, 0.70710677
      %v704 = vmul.f32 %v596, 0.70710677
      %v705 = vmul.f32 %v601, 0.70710677
      %v706 = vmul.f32 %v604, 0.70710677
      %v707 = vmul.f32 %v609, 0.70710677
      %v708 = vmul.f32 %v612, 0.70710677
      %v709 = vmul.f32 %v617, 0.70710677
      %v710 = vmul.f32 %v620, 0.70710677
      %v711 = vmul.f32 %v625, 0.70710677
      %v712 = vmul.f32 %v628, 0.70710677
      %v713 = vmul.f32 %v633, 0.70710677
      %v714 = vmul.f32 %v636, 0.70710677
      %v715 = vmul.f32 %v641, 0.70710677
      %v716 = vmul.f32 %v644, 0.70710677
      %v717 = vmul.f32 %v649, 0.70710677
      %v718 = vmul.f32 %v652, 0.70710677
      %v719 = verf.f32.pop %v687
      %v720 = verf.f32.pop %v688
      %v721 = verf.f32.pop %v689
      %v722 = verf.f32.pop %v690
      %v723 = verf.f32.pop %v691
      %v724 = verf.f32.pop %v692
      %v725 = verf.f32.pop %v693
      %v726 = verf.f32.pop %v694
      %v727 = verf.f32.pop %v695
      %v728 = verf.f32.pop %v696
      %v729 = verf.f32.pop %v697
      %v730 = verf.f32.pop %v698
      %v731 = verf.f32.pop %v699
      %v732 = verf.f32.pop %v700
      %v733 = verf.f32.pop %v701
      %v734 = verf.f32.pop %v702
      %v735 = verf.f32.pop %v703
      %v736 = verf.f32.pop %v704
      %v737 = verf.f32.pop %v705
      %v738 = verf.f32.pop %v706
      %v739 = verf.f32.pop %v707
      %v740 = verf.f32.pop %v708
      %v741 = verf.f32.pop %v709
      %v742 = verf.f32.pop %v710
      %v743 = verf.f32.pop %v711
      %v744 = verf.f32.pop %v712
      %v745 = verf.f32.pop %v713
      %v746 = verf.f32.pop %v714
      %v747 = verf.f32.pop %v715
      %v748 = verf.f32.pop %v716
      %v749 = verf.f32.pop %v717
      %v750 = verf.f32.pop %v718
      %v751 = vadd.f32 %v719, 1.0
      %v752 = vadd.f32 %v720, 1.0
      %v753 = vadd.f32 %v721, 1.0
      %v754 = vadd.f32 %v722, 1.0
      %v755 = vadd.f32 %v723, 1.0
      %v756 = vadd.f32 %v724, 1.0
      %v757 = vadd.f32 %v725, 1.0
      %v758 = vadd.f32 %v726, 1.0
      %v759 = vadd.f32 %v727, 1.0
      %v760 = vadd.f32 %v728, 1.0
      %v761 = vadd.f32 %v729, 1.0
      %v762 = vadd.f32 %v730, 1.0
      %v763 = vadd.f32 %v731, 1.0
      %v764 = vadd.f32 %v732, 1.0
      %v765 = vadd.f32 %v733, 1.0
      %v766 = vadd.f32 %v734, 1.0
      %v767 = vadd.f32 %v735, 1.0
      %v768 = vadd.f32 %v736, 1.0
      %v769 = vadd.f32 %v737, 1.0
      %v770 = vadd.f32 %v738, 1.0
      %v771 = vadd.f32 %v739, 1.0
      %v772 = vadd.f32 %v740, 1.0
      %v773 = vadd.f32 %v741, 1.0
      %v774 = vadd.f32 %v742, 1.0
      %v775 = vadd.f32 %v743, 1.0
      %v776 = vadd.f32 %v744, 1.0
      %v777 = vadd.f32 %v745, 1.0
      %v778 = vadd.f32 %v746, 1.0
      %v779 = vadd.f32 %v747, 1.0
      %v780 = vadd.f32 %v748, 1.0
      %v781 = vadd.f32 %v749, 1.0
      %v782 = vadd.f32 %v750, 1.0
      %v783 = vmul.f32 %v655, %v751
      %v784 = vmul.f32 %v656, %v752
      %v785 = vmul.f32 %v657, %v753
      %v786 = vmul.f32 %v658, %v754
      %v787 = vmul.f32 %v659, %v755
      %v788 = vmul.f32 %v660, %v756
      %v789 = vmul.f32 %v661, %v757
      %v790 = vmul.f32 %v662, %v758
      %v791 = vmul.f32 %v663, %v759
      %v792 = vmul.f32 %v664, %v760
      %v793 = vmul.f32 %v665, %v761
      %v794 = vmul.f32 %v666, %v762
      %v795 = vmul.f32 %v667, %v763
      %v796 = vmul.f32 %v668, %v764
      %v797 = vmul.f32 %v669, %v765
      %v798 = vmul.f32 %v670, %v766
      %v799 = vmul.f32 %v671, %v767
      %v800 = vmul.f32 %v672, %v768
      %v801 = vmul.f32 %v673, %v769
      %v802 = vmul.f32 %v674, %v770
      %v803 = vmul.f32 %v675, %v771
      %v804 = vmul.f32 %v676, %v772
      %v805 = vmul.f32 %v677, %v773
      %v806 = vmul.f32 %v678, %v774
      %v807 = vmul.f32 %v679, %v775
      %v808 = vmul.f32 %v680, %v776
      %v809 = vmul.f32 %v681, %v777
      %v810 = vmul.f32 %v682, %v778
      %v811 = vmul.f32 %v683, %v779
      %v812 = vmul.f32 %v684, %v780
      %v813 = vmul.f32 %v685, %v781
      %v814 = vmul.f32 %v686, %v782
      %v815 = vpack.c.bf16 %v784, %v783
      %v816 = vpack.c.bf16 %v786, %v785
      %v817 = vpack.c.bf16 %v788, %v787
      %v818 = vpack.c.bf16 %v790, %v789
      %v819 = vpack.c.bf16 %v792, %v791
      %v820 = vpack.c.bf16 %v794, %v793
      %v821 = vpack.c.bf16 %v796, %v795
      %v822 = vpack.c.bf16 %v798, %v797
      %v823 = vpack.c.bf16 %v800, %v799
      %v824 = vpack.c.bf16 %v802, %v801
      %v825 = vpack.c.bf16 %v804, %v803
      %v826 = vpack.c.bf16 %v806, %v805
      %v827 = vpack.c.bf16 %v808, %v807
      %v828 = vpack.c.bf16 %v810, %v809
      %v829 = vpack.c.bf16 %v812, %v811
      %v830 = vpack.c.bf16 %v814, %v813
      %v831 = vld [vmem:[%s3] sm:$0xf]
      %v832 = vld [vmem:[%s3 + $0x4] sm:$0xf]
      %v833 = vld [vmem:[%s3 + $0x8] sm:$0xf]
      %v834 = vld [vmem:[%s3 + $0xc] sm:$0xf]
      %v835 = vld [vmem:[%s4] sm:$0x1]
      %v837 = vlaneseq
      %v838 = vshrl.u32 %v837, 7
      %v839 = vsub.s32 0, %v838
      %v840 = vrot.slane %v835, %v839
      %v846 = vunpack.c.l.b16 %v831
      %v847 = vunpack.c.l.b16 %v832
      %v848 = vunpack.c.l.b16 %v833
      %v849 = vunpack.c.l.b16 %v834
      %v850 = vpack.c.b16 %v847, %v846
      %v851 = vpack.c.b16 %v849, %v848
      %v855 = vsel %vm445, %v815, 0
      %v858 = vsel %vm445, %v816, 0
      %v861 = vsel %vm445, %v817, 0
      %v864 = vsel %vm445, %v818, 0
      %v867 = vsel %vm445, %v819, 0
      %v870 = vsel %vm445, %v820, 0
      %v873 = vsel %vm445, %v821, 0
      %v876 = vsel %vm445, %v822, 0
      %v879 = vsel %vm445, %v823, 0
      %v882 = vsel %vm445, %v824, 0
      %v885 = vsel %vm445, %v825, 0
      %v888 = vsel %vm445, %v826, 0
      %v891 = vsel %vm445, %v827, 0
      %v894 = vsel %vm445, %v828, 0
      %v897 = vsel %vm445, %v829, 0
      %v900 = vsel %vm445, %v830, 0
      %902 = vmatprep.subr.bf16.mxu0 0
      %903 = vmatpush1.bf16.msra.mxu0 0
      %904 = vmatprep.subr.bf16.mxu0 0
      %905 = vmatpush1.bf16.msra.mxu0 0
      %906 = vmatprep.subr.bf16.mxu0 0
      %907 = vmatpush1.bf16.msra.mxu0 0
      %908 = vmatprep.subr.bf16.mxu0 0
      %909 = vmatpush1.bf16.msra.mxu0 0
      %910 = vmatprep.subr.bf16.mxu0 0
      %911 = vmatpush1.bf16.msra.mxu0 0
      %912 = vmatprep.subr.bf16.mxu0 0
      %913 = vmatpush1.bf16.msra.mxu0 0
      %914 = vmatprep.subr.bf16.mxu0 0
      %915 = vmatpush1.bf16.msra.mxu0 %v851
      %916 = vmatprep.subr.bf16.mxu0 0
      %917 = vmatpush1.bf16.msra.mxu0 %v850
      %918 = vmatprep.subr.bf16.mxu0 0
      %919 = vmatpush2.bf16.msra.mxu0 0
      %920 = vmatprep.subr.bf16.mxu0 0
      %921 = vmatpush2.bf16.msra.mxu0 0
      %922 = vmatprep.subr.bf16.mxu0 0
      %923 = vmatpush2.bf16.msra.mxu0 0
      %924 = vmatprep.subr.bf16.mxu0 0
      %925 = vmatpush2.bf16.msra.mxu0 0
      %926 = vmatprep.subr.bf16.mxu0 0
      %927 = vmatpush2.bf16.msra.mxu0 0
      %928 = vmatprep.subr.bf16.mxu0 0
      %929 = vmatpush2.bf16.msra.mxu0 0
      %930 = vmatprep.subr.bf16.mxu0 0
      %931 = vmatpush2.bf16.msra.mxu0 0
      %932 = vmatprep.subr.bf16.mxu0 0
      %933 = vmatpush2.bf16.msra.mxu0 0
      %934 = vmatprep.mubr.bf16.mxu0 0
      %935 = vmatmul.mubr.bf16.gmra.mxu0 %v855
      %v936 = vpop.f32.mrf.mxu0
      %v937 = vadd.f32 %v840, %v936
      %v938 = vpop.f32.mrf.mxu0
      %v939 = vpop.f32.mrf.mxu0
      %v940 = vadd.f32 %v840, %v939
      %v941 = vpop.f32.mrf.mxu0
      %942 = vmatprep.mubr.bf16.mxu0 0
      %943 = vmatmul.mubr.bf16.gmra.mxu0 %v858
      %v944 = vpop.f32.mrf.mxu0
      %v945 = vadd.f32 %v840, %v944
      %v946 = vpop.f32.mrf.mxu0
      %v947 = vpop.f32.mrf.mxu0
      %v948 = vadd.f32 %v840, %v947
      %v949 = vpop.f32.mrf.mxu0
      %950 = vmatprep.mubr.bf16.mxu0 0
      %951 = vmatmul.mubr.bf16.gmra.mxu0 %v861
      %v952 = vpop.f32.mrf.mxu0
      %v953 = vadd.f32 %v840, %v952
      %v954 = vpop.f32.mrf.mxu0
      %v955 = vpop.f32.mrf.mxu0
      %v956 = vadd.f32 %v840, %v955
      %v957 = vpop.f32.mrf.mxu0
      %958 = vmatprep.mubr.bf16.mxu0 0
      %959 = vmatmul.mubr.bf16.gmra.mxu0 %v864
      %v960 = vpop.f32.mrf.mxu0
      %v961 = vadd.f32 %v840, %v960
      %v962 = vpop.f32.mrf.mxu0
      %v963 = vpop.f32.mrf.mxu0
      %v964 = vadd.f32 %v840, %v963
      %v965 = vpop.f32.mrf.mxu0
      %966 = vmatprep.mubr.bf16.mxu0 0
      %967 = vmatmul.mubr.bf16.gmra.mxu0 %v867
      %v968 = vpop.f32.mrf.mxu0
      %v969 = vadd.f32 %v840, %v968
      %v970 = vpop.f32.mrf.mxu0
      %v971 = vpop.f32.mrf.mxu0
      %v972 = vadd.f32 %v840, %v971
      %v973 = vpop.f32.mrf.mxu0
      %974 = vmatprep.mubr.bf16.mxu0 0
      %975 = vmatmul.mubr.bf16.gmra.mxu0 %v870
      %v976 = vpop.f32.mrf.mxu0
      %v977 = vadd.f32 %v840, %v976
      %v978 = vpop.f32.mrf.mxu0
      %v979 = vpop.f32.mrf.mxu0
      %v980 = vadd.f32 %v840, %v979
      %v981 = vpop.f32.mrf.mxu0
      %982 = vmatprep.mubr.bf16.mxu0 0
      %983 = vmatmul.mubr.bf16.gmra.mxu0 %v873
      %v984 = vpop.f32.mrf.mxu0
      %v985 = vadd.f32 %v840, %v984
      %v986 = vpop.f32.mrf.mxu0
      %v987 = vpop.f32.mrf.mxu0
      %v988 = vadd.f32 %v840, %v987
      %v989 = vpop.f32.mrf.mxu0
      %990 = vmatprep.mubr.bf16.mxu0 0
      %991 = vmatmul.mubr.bf16.gmra.mxu0 %v876
      %v992 = vpop.f32.mrf.mxu0
      %v993 = vadd.f32 %v840, %v992
      %v994 = vpop.f32.mrf.mxu0
      %v995 = vpop.f32.mrf.mxu0
      %v996 = vadd.f32 %v840, %v995
      %v997 = vpop.f32.mrf.mxu0
      %998 = vmatprep.mubr.bf16.mxu0 0
      %999 = vmatmul.mubr.bf16.gmra.mxu0 %v879
      %v1000 = vpop.f32.mrf.mxu0
      %v1001 = vadd.f32 %v840, %v1000
      %v1002 = vpop.f32.mrf.mxu0
      %v1003 = vpop.f32.mrf.mxu0
      %v1004 = vadd.f32 %v840, %v1003
      %v1005 = vpop.f32.mrf.mxu0
      %1006 = vmatprep.mubr.bf16.mxu0 0
      %1007 = vmatmul.mubr.bf16.gmra.mxu0 %v882
      %v1008 = vpop.f32.mrf.mxu0
      %v1009 = vadd.f32 %v840, %v1008
      %v1010 = vpop.f32.mrf.mxu0
      %v1011 = vpop.f32.mrf.mxu0
      %v1012 = vadd.f32 %v840, %v1011
      %v1013 = vpop.f32.mrf.mxu0
      %1014 = vmatprep.mubr.bf16.mxu0 0
      %1015 = vmatmul.mubr.bf16.gmra.mxu0 %v885
      %v1016 = vpop.f32.mrf.mxu0
      %v1017 = vadd.f32 %v840, %v1016
      %v1018 = vpop.f32.mrf.mxu0
      %v1019 = vpop.f32.mrf.mxu0
      %v1020 = vadd.f32 %v840, %v1019
      %v1021 = vpop.f32.mrf.mxu0
      %1022 = vmatprep.mubr.bf16.mxu0 0
      %1023 = vmatmul.mubr.bf16.gmra.mxu0 %v888
      %v1024 = vpop.f32.mrf.mxu0
      %v1025 = vadd.f32 %v840, %v1024
      %v1026 = vpop.f32.mrf.mxu0
      %v1027 = vpop.f32.mrf.mxu0
      %v1028 = vadd.f32 %v840, %v1027
      %v1029 = vpop.f32.mrf.mxu0
      %1030 = vmatprep.mubr.bf16.mxu0 0
      %1031 = vmatmul.mubr.bf16.gmra.mxu0 %v891
      %v1032 = vpop.f32.mrf.mxu0
      %v1033 = vadd.f32 %v840, %v1032
      %v1034 = vpop.f32.mrf.mxu0
      %v1035 = vpop.f32.mrf.mxu0
      %v1036 = vadd.f32 %v840, %v1035
      %v1037 = vpop.f32.mrf.mxu0
      %1038 = vmatprep.mubr.bf16.mxu0 0
      %1039 = vmatmul.mubr.bf16.gmra.mxu0 %v894
      %v1040 = vpop.f32.mrf.mxu0
      %v1041 = vadd.f32 %v840, %v1040
      %v1042 = vpop.f32.mrf.mxu0
      %v1043 = vpop.f32.mrf.mxu0
      %v1044 = vadd.f32 %v840, %v1043
      %v1045 = vpop.f32.mrf.mxu0
      %1046 = vmatprep.mubr.bf16.mxu0 0
      %1047 = vmatmul.mubr.bf16.gmra.mxu0 %v897
      %v1048 = vpop.f32.mrf.mxu0
      %v1049 = vadd.f32 %v840, %v1048
      %v1050 = vpop.f32.mrf.mxu0
      %v1051 = vpop.f32.mrf.mxu0
      %v1052 = vadd.f32 %v840, %v1051
      %v1053 = vpop.f32.mrf.mxu0
      %1054 = vmatprep.mubr.bf16.mxu0 0
      %1055 = vmatmul.mubr.bf16.gmra.mxu0 %v900
      %v1056 = vpop.f32.mrf.mxu0
      %v1057 = vadd.f32 %v840, %v1056
      %v1058 = vpop.f32.mrf.mxu0
      %v1059 = vpop.f32.mrf.mxu0
      %v1060 = vadd.f32 %v840, %v1059
      %v1061 = vpop.f32.mrf.mxu0
      %1062 = vdwg.mxu0
      %vm1063 = vcmask 130048
      %v1064 = vsel %vm1063, %v937, -inf
      %v1065 = vrot.slane %v1064, 4
      %v1066 = vmax.f32 %v1064, %v1065
      %v1067 = vrot.slane %v1066, 2
      %v1068 = vmax.f32 %v1066, %v1067
      %v1069 = vrot.slane %v1068, 1
      %v1070 = vmax.f32 %v1068, %v1069
      %v1071 = vsel %vm1063, %v940, -inf
      %v1072 = vrot.slane %v1071, 4
      %v1073 = vmax.f32 %v1071, %v1072
      %v1074 = vrot.slane %v1073, 2
      %v1075 = vmax.f32 %v1073, %v1074
      %v1076 = vrot.slane %v1075, 1
      %v1077 = vmax.f32 %v1075, %v1076
      %v1078 = vsel %vm1063, %v945, -inf
      %v1079 = vrot.slane %v1078, 4
      %v1080 = vmax.f32 %v1078, %v1079
      %v1081 = vrot.slane %v1080, 2
      %v1082 = vmax.f32 %v1080, %v1081
      %v1083 = vrot.slane %v1082, 1
      %v1084 = vmax.f32 %v1082, %v1083
      %v1085 = vsel %vm1063, %v948, -inf
      %v1086 = vrot.slane %v1085, 4
      %v1087 = vmax.f32 %v1085, %v1086
      %v1088 = vrot.slane %v1087, 2
      %v1089 = vmax.f32 %v1087, %v1088
      %v1090 = vrot.slane %v1089, 1
      %v1091 = vmax.f32 %v1089, %v1090
      %v1092 = vsel %vm1063, %v953, -inf
      %v1093 = vrot.slane %v1092, 4
      %v1094 = vmax.f32 %v1092, %v1093
      %v1095 = vrot.slane %v1094, 2
      %v1096 = vmax.f32 %v1094, %v1095
      %v1097 = vrot.slane %v1096, 1
      %v1098 = vmax.f32 %v1096, %v1097
      %v1099 = vsel %vm1063, %v956, -inf
      %v1100 = vrot.slane %v1099, 4
      %v1101 = vmax.f32 %v1099, %v1100
      %v1102 = vrot.slane %v1101, 2
      %v1103 = vmax.f32 %v1101, %v1102
      %v1104 = vrot.slane %v1103, 1
      %v1105 = vmax.f32 %v1103, %v1104
      %v1106 = vsel %vm1063, %v961, -inf
      %v1107 = vrot.slane %v1106, 4
      %v1108 = vmax.f32 %v1106, %v1107
      %v1109 = vrot.slane %v1108, 2
      %v1110 = vmax.f32 %v1108, %v1109
      %v1111 = vrot.slane %v1110, 1
      %v1112 = vmax.f32 %v1110, %v1111
      %v1113 = vsel %vm1063, %v964, -inf
      %v1114 = vrot.slane %v1113, 4
      %v1115 = vmax.f32 %v1113, %v1114
      %v1116 = vrot.slane %v1115, 2
      %v1117 = vmax.f32 %v1115, %v1116
      %v1118 = vrot.slane %v1117, 1
      %v1119 = vmax.f32 %v1117, %v1118
      %v1120 = vsel %vm1063, %v969, -inf
      %v1121 = vrot.slane %v1120, 4
      %v1122 = vmax.f32 %v1120, %v1121
      %v1123 = vrot.slane %v1122, 2
      %v1124 = vmax.f32 %v1122, %v1123
      %v1125 = vrot.slane %v1124, 1
      %v1126 = vmax.f32 %v1124, %v1125
      %v1127 = vsel %vm1063, %v972, -inf
      %v1128 = vrot.slane %v1127, 4
      %v1129 = vmax.f32 %v1127, %v1128
      %v1130 = vrot.slane %v1129, 2
      %v1131 = vmax.f32 %v1129, %v1130
      %v1132 = vrot.slane %v1131, 1
      %v1133 = vmax.f32 %v1131, %v1132
      %v1134 = vsel %vm1063, %v977, -inf
      %v1135 = vrot.slane %v1134, 4
      %v1136 = vmax.f32 %v1134, %v1135
      %v1137 = vrot.slane %v1136, 2
      %v1138 = vmax.f32 %v1136, %v1137
      %v1139 = vrot.slane %v1138, 1
      %v1140 = vmax.f32 %v1138, %v1139
      %v1141 = vsel %vm1063, %v980, -inf
      %v1142 = vrot.slane %v1141, 4
      %v1143 = vmax.f32 %v1141, %v1142
      %v1144 = vrot.slane %v1143, 2
      %v1145 = vmax.f32 %v1143, %v1144
      %v1146 = vrot.slane %v1145, 1
      %v1147 = vmax.f32 %v1145, %v1146
      %v1148 = vsel %vm1063, %v985, -inf
      %v1149 = vrot.slane %v1148, 4
      %v1150 = vmax.f32 %v1148, %v1149
      %v1151 = vrot.slane %v1150, 2
      %v1152 = vmax.f32 %v1150, %v1151
      %v1153 = vrot.slane %v1152, 1
      %v1154 = vmax.f32 %v1152, %v1153
      %v1155 = vsel %vm1063, %v988, -inf
      %v1156 = vrot.slane %v1155, 4
      %v1157 = vmax.f32 %v1155, %v1156
      %v1158 = vrot.slane %v1157, 2
      %v1159 = vmax.f32 %v1157, %v1158
      %v1160 = vrot.slane %v1159, 1
      %v1161 = vmax.f32 %v1159, %v1160
      %v1162 = vsel %vm1063, %v993, -inf
      %v1163 = vrot.slane %v1162, 4
      %v1164 = vmax.f32 %v1162, %v1163
      %v1165 = vrot.slane %v1164, 2
      %v1166 = vmax.f32 %v1164, %v1165
      %v1167 = vrot.slane %v1166, 1
      %v1168 = vmax.f32 %v1166, %v1167
      %v1169 = vsel %vm1063, %v996, -inf
      %v1170 = vrot.slane %v1169, 4
      %v1171 = vmax.f32 %v1169, %v1170
      %v1172 = vrot.slane %v1171, 2
      %v1173 = vmax.f32 %v1171, %v1172
      %v1174 = vrot.slane %v1173, 1
      %v1175 = vmax.f32 %v1173, %v1174
      %v1176 = vsel %vm1063, %v1001, -inf
      %v1177 = vrot.slane %v1176, 4
      %v1178 = vmax.f32 %v1176, %v1177
      %v1179 = vrot.slane %v1178, 2
      %v1180 = vmax.f32 %v1178, %v1179
      %v1181 = vrot.slane %v1180, 1
      %v1182 = vmax.f32 %v1180, %v1181
      %v1183 = vsel %vm1063, %v1004, -inf
      %v1184 = vrot.slane %v1183, 4
      %v1185 = vmax.f32 %v1183, %v1184
      %v1186 = vrot.slane %v1185, 2
      %v1187 = vmax.f32 %v1185, %v1186
      %v1188 = vrot.slane %v1187, 1
      %v1189 = vmax.f32 %v1187, %v1188
      %v1190 = vsel %vm1063, %v1009, -inf
      %v1191 = vrot.slane %v1190, 4
      %v1192 = vmax.f32 %v1190, %v1191
      %v1193 = vrot.slane %v1192, 2
      %v1194 = vmax.f32 %v1192, %v1193
      %v1195 = vrot.slane %v1194, 1
      %v1196 = vmax.f32 %v1194, %v1195
      %v1197 = vsel %vm1063, %v1012, -inf
      %v1198 = vrot.slane %v1197, 4
      %v1199 = vmax.f32 %v1197, %v1198
      %v1200 = vrot.slane %v1199, 2
      %v1201 = vmax.f32 %v1199, %v1200
      %v1202 = vrot.slane %v1201, 1
      %v1203 = vmax.f32 %v1201, %v1202
      %v1204 = vsel %vm1063, %v1017, -inf
      %v1205 = vrot.slane %v1204, 4
      %v1206 = vmax.f32 %v1204, %v1205
      %v1207 = vrot.slane %v1206, 2
      %v1208 = vmax.f32 %v1206, %v1207
      %v1209 = vrot.slane %v1208, 1
      %v1210 = vmax.f32 %v1208, %v1209
      %v1211 = vsel %vm1063, %v1020, -inf
      %v1212 = vrot.slane %v1211, 4
      %v1213 = vmax.f32 %v1211, %v1212
      %v1214 = vrot.slane %v1213, 2
      %v1215 = vmax.f32 %v1213, %v1214
      %v1216 = vrot.slane %v1215, 1
      %v1217 = vmax.f32 %v1215, %v1216
      %v1218 = vsel %vm1063, %v1025, -inf
      %v1219 = vrot.slane %v1218, 4
      %v1220 = vmax.f32 %v1218, %v1219
      %v1221 = vrot.slane %v1220, 2
      %v1222 = vmax.f32 %v1220, %v1221
      %v1223 = vrot.slane %v1222, 1
      %v1224 = vmax.f32 %v1222, %v1223
      %v1225 = vsel %vm1063, %v1028, -inf
      %v1226 = vrot.slane %v1225, 4
      %v1227 = vmax.f32 %v1225, %v1226
      %v1228 = vrot.slane %v1227, 2
      %v1229 = vmax.f32 %v1227, %v1228
      %v1230 = vrot.slane %v1229, 1
      %v1231 = vmax.f32 %v1229, %v1230
      %v1232 = vsel %vm1063, %v1033, -inf
      %v1233 = vrot.slane %v1232, 4
      %v1234 = vmax.f32 %v1232, %v1233
      %v1235 = vrot.slane %v1234, 2
      %v1236 = vmax.f32 %v1234, %v1235
      %v1237 = vrot.slane %v1236, 1
      %v1238 = vmax.f32 %v1236, %v1237
      %v1239 = vsel %vm1063, %v1036, -inf
      %v1240 = vrot.slane %v1239, 4
      %v1241 = vmax.f32 %v1239, %v1240
      %v1242 = vrot.slane %v1241, 2
      %v1243 = vmax.f32 %v1241, %v1242
      %v1244 = vrot.slane %v1243, 1
      %v1245 = vmax.f32 %v1243, %v1244
      %v1246 = vsel %vm1063, %v1041, -inf
      %v1247 = vrot.slane %v1246, 4
      %v1248 = vmax.f32 %v1246, %v1247
      %v1249 = vrot.slane %v1248, 2
      %v1250 = vmax.f32 %v1248, %v1249
      %v1251 = vrot.slane %v1250, 1
      %v1252 = vmax.f32 %v1250, %v1251
      %v1253 = vsel %vm1063, %v1044, -inf
      %v1254 = vrot.slane %v1253, 4
      %v1255 = vmax.f32 %v1253, %v1254
      %v1256 = vrot.slane %v1255, 2
      %v1257 = vmax.f32 %v1255, %v1256
      %v1258 = vrot.slane %v1257, 1
      %v1259 = vmax.f32 %v1257, %v1258
      %v1260 = vsel %vm1063, %v1049, -inf
      %v1261 = vrot.slane %v1260, 4
      %v1262 = vmax.f32 %v1260, %v1261
      %v1263 = vrot.slane %v1262, 2
      %v1264 = vmax.f32 %v1262, %v1263
      %v1265 = vrot.slane %v1264, 1
      %v1266 = vmax.f32 %v1264, %v1265
      %v1267 = vsel %vm1063, %v1052, -inf
      %v1268 = vrot.slane %v1267, 4
      %v1269 = vmax.f32 %v1267, %v1268
      %v1270 = vrot.slane %v1269, 2
      %v1271 = vmax.f32 %v1269, %v1270
      %v1272 = vrot.slane %v1271, 1
      %v1273 = vmax.f32 %v1271, %v1272
      %v1274 = vsel %vm1063, %v1057, -inf
      %v1275 = vrot.slane %v1274, 4
      %v1276 = vmax.f32 %v1274, %v1275
      %v1277 = vrot.slane %v1276, 2
      %v1278 = vmax.f32 %v1276, %v1277
      %v1279 = vrot.slane %v1278, 1
      %v1280 = vmax.f32 %v1278, %v1279
      %v1281 = vsel %vm1063, %v1060, -inf
      %v1282 = vrot.slane %v1281, 4
      %v1283 = vmax.f32 %v1281, %v1282
      %v1284 = vrot.slane %v1283, 2
      %v1285 = vmax.f32 %v1283, %v1284
      %v1286 = vrot.slane %v1285, 1
      %v1287 = vmax.f32 %v1285, %v1286
      %v1288 = vsub.f32 %v937, %v1070
      %v1289 = vsub.f32 %v940, %v1077
      %v1290 = vsub.f32 %v945, %v1084
      %v1291 = vsub.f32 %v948, %v1091
      %v1292 = vsub.f32 %v953, %v1098
      %v1293 = vsub.f32 %v956, %v1105
      %v1294 = vsub.f32 %v961, %v1112
      %v1295 = vsub.f32 %v964, %v1119
      %v1296 = vsub.f32 %v969, %v1126
      %v1297 = vsub.f32 %v972, %v1133
      %v1298 = vsub.f32 %v977, %v1140
      %v1299 = vsub.f32 %v980, %v1147
      %v1300 = vsub.f32 %v985, %v1154
      %v1301 = vsub.f32 %v988, %v1161
      %v1302 = vsub.f32 %v993, %v1168
      %v1303 = vsub.f32 %v996, %v1175
      %v1304 = vsub.f32 %v1001, %v1182
      %v1305 = vsub.f32 %v1004, %v1189
      %v1306 = vsub.f32 %v1009, %v1196
      %v1307 = vsub.f32 %v1012, %v1203
      %v1308 = vsub.f32 %v1017, %v1210
      %v1309 = vsub.f32 %v1020, %v1217
      %v1310 = vsub.f32 %v1025, %v1224
      %v1311 = vsub.f32 %v1028, %v1231
      %v1312 = vsub.f32 %v1033, %v1238
      %v1313 = vsub.f32 %v1036, %v1245
      %v1314 = vsub.f32 %v1041, %v1252
      %v1315 = vsub.f32 %v1044, %v1259
      %v1316 = vsub.f32 %v1049, %v1266
      %v1317 = vsub.f32 %v1052, %v1273
      %v1318 = vsub.f32 %v1057, %v1280
      %v1319 = vsub.f32 %v1060, %v1287
      %v1320 = vmul.f32 %v1288, 1.442695
      %v1321 = vpow.pop %v1320
      %v1322 = vmul.f32 %v1289, 1.442695
      %v1323 = vpow.pop %v1322
      %v1324 = vmul.f32 %v1290, 1.442695
      %v1325 = vpow.pop %v1324
      %v1326 = vmul.f32 %v1291, 1.442695
      %v1327 = vpow.pop %v1326
      %v1328 = vmul.f32 %v1292, 1.442695
      %v1329 = vpow.pop %v1328
      %v1330 = vmul.f32 %v1293, 1.442695
      %v1331 = vpow.pop %v1330
      %v1332 = vmul.f32 %v1294, 1.442695
      %v1333 = vpow.pop %v1332
      %v1334 = vmul.f32 %v1295, 1.442695
      %v1335 = vpow.pop %v1334
      %v1336 = vmul.f32 %v1296, 1.442695
      %v1337 = vpow.pop %v1336
      %v1338 = vmul.f32 %v1297, 1.442695
      %v1339 = vpow.pop %v1338
      %v1340 = vmul.f32 %v1298, 1.442695
      %v1341 = vpow.pop %v1340
      %v1342 = vmul.f32 %v1299, 1.442695
      %v1343 = vpow.pop %v1342
      %v1344 = vmul.f32 %v1300, 1.442695
      %v1345 = vpow.pop %v1344
      %v1346 = vmul.f32 %v1301, 1.442695
      %v1347 = vpow.pop %v1346
      %v1348 = vmul.f32 %v1302, 1.442695
      %v1349 = vpow.pop %v1348
      %v1350 = vmul.f32 %v1303, 1.442695
      %v1351 = vpow.pop %v1350
      %v1352 = vmul.f32 %v1304, 1.442695
      %v1353 = vpow.pop %v1352
      %v1354 = vmul.f32 %v1305, 1.442695
      %v1355 = vpow.pop %v1354
      %v1356 = vmul.f32 %v1306, 1.442695
      %v1357 = vpow.pop %v1356
      %v1358 = vmul.f32 %v1307, 1.442695
      %v1359 = vpow.pop %v1358
      %v1360 = vmul.f32 %v1308, 1.442695
      %v1361 = vpow.pop %v1360
      %v1362 = vmul.f32 %v1309, 1.442695
      %v1363 = vpow.pop %v1362
      %v1364 = vmul.f32 %v1310, 1.442695
      %v1365 = vpow.pop %v1364
      %v1366 = vmul.f32 %v1311, 1.442695
      %v1367 = vpow.pop %v1366
      %v1368 = vmul.f32 %v1312, 1.442695
      %v1369 = vpow.pop %v1368
      %v1370 = vmul.f32 %v1313, 1.442695
      %v1371 = vpow.pop %v1370
      %v1372 = vmul.f32 %v1314, 1.442695
      %v1373 = vpow.pop %v1372
      %v1374 = vmul.f32 %v1315, 1.442695
      %v1375 = vpow.pop %v1374
      %v1376 = vmul.f32 %v1316, 1.442695
      %v1377 = vpow.pop %v1376
      %v1378 = vmul.f32 %v1317, 1.442695
      %v1379 = vpow.pop %v1378
      %v1380 = vmul.f32 %v1318, 1.442695
      %v1381 = vpow.pop %v1380
      %v1382 = vmul.f32 %v1319, 1.442695
      %v1383 = vpow.pop %v1382
      %v1384 = vsel %vm1063, %v1321, 0.0
      %v1385 = vrot.slane %v1384, 4
      %v1386 = vadd.f32 %v1384, %v1385
      %v1387 = vrot.slane %v1386, 2
      %v1388 = vadd.f32 %v1386, %v1387
      %v1389 = vrot.slane %v1388, 1
      %v1390 = vadd.f32 %v1388, %v1389
      %v1391 = vsel %vm1063, %v1323, 0.0
      %v1392 = vrot.slane %v1391, 4
      %v1393 = vadd.f32 %v1391, %v1392
      %v1394 = vrot.slane %v1393, 2
      %v1395 = vadd.f32 %v1393, %v1394
      %v1396 = vrot.slane %v1395, 1
      %v1397 = vadd.f32 %v1395, %v1396
      %v1398 = vsel %vm1063, %v1325, 0.0
      %v1399 = vrot.slane %v1398, 4
      %v1400 = vadd.f32 %v1398, %v1399
      %v1401 = vrot.slane %v1400, 2
      %v1402 = vadd.f32 %v1400, %v1401
      %v1403 = vrot.slane %v1402, 1
      %v1404 = vadd.f32 %v1402, %v1403
      %v1405 = vsel %vm1063, %v1327, 0.0
      %v1406 = vrot.slane %v1405, 4
      %v1407 = vadd.f32 %v1405, %v1406
      %v1408 = vrot.slane %v1407, 2
      %v1409 = vadd.f32 %v1407, %v1408
      %v1410 = vrot.slane %v1409, 1
      %v1411 = vadd.f32 %v1409, %v1410
      %v1412 = vsel %vm1063, %v1329, 0.0
      %v1413 = vrot.slane %v1412, 4
      %v1414 = vadd.f32 %v1412, %v1413
      %v1415 = vrot.slane %v1414, 2
      %v1416 = vadd.f32 %v1414, %v1415
      %v1417 = vrot.slane %v1416, 1
      %v1418 = vadd.f32 %v1416, %v1417
      %v1419 = vsel %vm1063, %v1331, 0.0
      %v1420 = vrot.slane %v1419, 4
      %v1421 = vadd.f32 %v1419, %v1420
      %v1422 = vrot.slane %v1421, 2
      %v1423 = vadd.f32 %v1421, %v1422
      %v1424 = vrot.slane %v1423, 1
      %v1425 = vadd.f32 %v1423, %v1424
      %v1426 = vsel %vm1063, %v1333, 0.0
      %v1427 = vrot.slane %v1426, 4
      %v1428 = vadd.f32 %v1426, %v1427
      %v1429 = vrot.slane %v1428, 2
      %v1430 = vadd.f32 %v1428, %v1429
      %v1431 = vrot.slane %v1430, 1
      %v1432 = vadd.f32 %v1430, %v1431
      %v1433 = vsel %vm1063, %v1335, 0.0
      %v1434 = vrot.slane %v1433, 4
      %v1435 = vadd.f32 %v1433, %v1434
      %v1436 = vrot.slane %v1435, 2
      %v1437 = vadd.f32 %v1435, %v1436
      %v1438 = vrot.slane %v1437, 1
      %v1439 = vadd.f32 %v1437, %v1438
      %v1440 = vsel %vm1063, %v1337, 0.0
      %v1441 = vrot.slane %v1440, 4
      %v1442 = vadd.f32 %v1440, %v1441
      %v1443 = vrot.slane %v1442, 2
      %v1444 = vadd.f32 %v1442, %v1443
      %v1445 = vrot.slane %v1444, 1
      %v1446 = vadd.f32 %v1444, %v1445
      %v1447 = vsel %vm1063, %v1339, 0.0
      %v1448 = vrot.slane %v1447, 4
      %v1449 = vadd.f32 %v1447, %v1448
      %v1450 = vrot.slane %v1449, 2
      %v1451 = vadd.f32 %v1449, %v1450
      %v1452 = vrot.slane %v1451, 1
      %v1453 = vadd.f32 %v1451, %v1452
      %v1454 = vsel %vm1063, %v1341, 0.0
      %v1455 = vrot.slane %v1454, 4
      %v1456 = vadd.f32 %v1454, %v1455
      %v1457 = vrot.slane %v1456, 2
      %v1458 = vadd.f32 %v1456, %v1457
      %v1459 = vrot.slane %v1458, 1
      %v1460 = vadd.f32 %v1458, %v1459
      %v1461 = vsel %vm1063, %v1343, 0.0
      %v1462 = vrot.slane %v1461, 4
      %v1463 = vadd.f32 %v1461, %v1462
      %v1464 = vrot.slane %v1463, 2
      %v1465 = vadd.f32 %v1463, %v1464
      %v1466 = vrot.slane %v1465, 1
      %v1467 = vadd.f32 %v1465, %v1466
      %v1468 = vsel %vm1063, %v1345, 0.0
      %v1469 = vrot.slane %v1468, 4
      %v1470 = vadd.f32 %v1468, %v1469
      %v1471 = vrot.slane %v1470, 2
      %v1472 = vadd.f32 %v1470, %v1471
      %v1473 = vrot.slane %v1472, 1
      %v1474 = vadd.f32 %v1472, %v1473
      %v1475 = vsel %vm1063, %v1347, 0.0
      %v1476 = vrot.slane %v1475, 4
      %v1477 = vadd.f32 %v1475, %v1476
      %v1478 = vrot.slane %v1477, 2
      %v1479 = vadd.f32 %v1477, %v1478
      %v1480 = vrot.slane %v1479, 1
      %v1481 = vadd.f32 %v1479, %v1480
      %v1482 = vsel %vm1063, %v1349, 0.0
      %v1483 = vrot.slane %v1482, 4
      %v1484 = vadd.f32 %v1482, %v1483
      %v1485 = vrot.slane %v1484, 2
      %v1486 = vadd.f32 %v1484, %v1485
      %v1487 = vrot.slane %v1486, 1
      %v1488 = vadd.f32 %v1486, %v1487
      %v1489 = vsel %vm1063, %v1351, 0.0
      %v1490 = vrot.slane %v1489, 4
      %v1491 = vadd.f32 %v1489, %v1490
      %v1492 = vrot.slane %v1491, 2
      %v1493 = vadd.f32 %v1491, %v1492
      %v1494 = vrot.slane %v1493, 1
      %v1495 = vadd.f32 %v1493, %v1494
      %v1496 = vsel %vm1063, %v1353, 0.0
      %v1497 = vrot.slane %v1496, 4
      %v1498 = vadd.f32 %v1496, %v1497
      %v1499 = vrot.slane %v1498, 2
      %v1500 = vadd.f32 %v1498, %v1499
      %v1501 = vrot.slane %v1500, 1
      %v1502 = vadd.f32 %v1500, %v1501
      %v1503 = vsel %vm1063, %v1355, 0.0
      %v1504 = vrot.slane %v1503, 4
      %v1505 = vadd.f32 %v1503, %v1504
      %v1506 = vrot.slane %v1505, 2
      %v1507 = vadd.f32 %v1505, %v1506
      %v1508 = vrot.slane %v1507, 1
      %v1509 = vadd.f32 %v1507, %v1508
      %v1510 = vsel %vm1063, %v1357, 0.0
      %v1511 = vrot.slane %v1510, 4
      %v1512 = vadd.f32 %v1510, %v1511
      %v1513 = vrot.slane %v1512, 2
      %v1514 = vadd.f32 %v1512, %v1513
      %v1515 = vrot.slane %v1514, 1
      %v1516 = vadd.f32 %v1514, %v1515
      %v1517 = vsel %vm1063, %v1359, 0.0
      %v1518 = vrot.slane %v1517, 4
      %v1519 = vadd.f32 %v1517, %v1518
      %v1520 = vrot.slane %v1519, 2
      %v1521 = vadd.f32 %v1519, %v1520
      %v1522 = vrot.slane %v1521, 1
      %v1523 = vadd.f32 %v1521, %v1522
      %v1524 = vsel %vm1063, %v1361, 0.0
      %v1525 = vrot.slane %v1524, 4
      %v1526 = vadd.f32 %v1524, %v1525
      %v1527 = vrot.slane %v1526, 2
      %v1528 = vadd.f32 %v1526, %v1527
      %v1529 = vrot.slane %v1528, 1
      %v1530 = vadd.f32 %v1528, %v1529
      %v1531 = vsel %vm1063, %v1363, 0.0
      %v1532 = vrot.slane %v1531, 4
      %v1533 = vadd.f32 %v1531, %v1532
      %v1534 = vrot.slane %v1533, 2
      %v1535 = vadd.f32 %v1533, %v1534
      %v1536 = vrot.slane %v1535, 1
      %v1537 = vadd.f32 %v1535, %v1536
      %v1538 = vsel %vm1063, %v1365, 0.0
      %v1539 = vrot.slane %v1538, 4
      %v1540 = vadd.f32 %v1538, %v1539
      %v1541 = vrot.slane %v1540, 2
      %v1542 = vadd.f32 %v1540, %v1541
      %v1543 = vrot.slane %v1542, 1
      %v1544 = vadd.f32 %v1542, %v1543
      %v1545 = vsel %vm1063, %v1367, 0.0
      %v1546 = vrot.slane %v1545, 4
      %v1547 = vadd.f32 %v1545, %v1546
      %v1548 = vrot.slane %v1547, 2
      %v1549 = vadd.f32 %v1547, %v1548
      %v1550 = vrot.slane %v1549, 1
      %v1551 = vadd.f32 %v1549, %v1550
      %v1552 = vsel %vm1063, %v1369, 0.0
      %v1553 = vrot.slane %v1552, 4
      %v1554 = vadd.f32 %v1552, %v1553
      %v1555 = vrot.slane %v1554, 2
      %v1556 = vadd.f32 %v1554, %v1555
      %v1557 = vrot.slane %v1556, 1
      %v1558 = vadd.f32 %v1556, %v1557
      %v1559 = vsel %vm1063, %v1371, 0.0
      %v1560 = vrot.slane %v1559, 4
      %v1561 = vadd.f32 %v1559, %v1560
      %v1562 = vrot.slane %v1561, 2
      %v1563 = vadd.f32 %v1561, %v1562
      %v1564 = vrot.slane %v1563, 1
      %v1565 = vadd.f32 %v1563, %v1564
      %v1566 = vsel %vm1063, %v1373, 0.0
      %v1567 = vrot.slane %v1566, 4
      %v1568 = vadd.f32 %v1566, %v1567
      %v1569 = vrot.slane %v1568, 2
      %v1570 = vadd.f32 %v1568, %v1569
      %v1571 = vrot.slane %v1570, 1
      %v1572 = vadd.f32 %v1570, %v1571
      %v1573 = vsel %vm1063, %v1375, 0.0
      %v1574 = vrot.slane %v1573, 4
      %v1575 = vadd.f32 %v1573, %v1574
      %v1576 = vrot.slane %v1575, 2
      %v1577 = vadd.f32 %v1575, %v1576
      %v1578 = vrot.slane %v1577, 1
      %v1579 = vadd.f32 %v1577, %v1578
      %v1580 = vsel %vm1063, %v1377, 0.0
      %v1581 = vrot.slane %v1580, 4
      %v1582 = vadd.f32 %v1580, %v1581
      %v1583 = vrot.slane %v1582, 2
      %v1584 = vadd.f32 %v1582, %v1583
      %v1585 = vrot.slane %v1584, 1
      %v1586 = vadd.f32 %v1584, %v1585
      %v1587 = vsel %vm1063, %v1379, 0.0
      %v1588 = vrot.slane %v1587, 4
      %v1589 = vadd.f32 %v1587, %v1588
      %v1590 = vrot.slane %v1589, 2
      %v1591 = vadd.f32 %v1589, %v1590
      %v1592 = vrot.slane %v1591, 1
      %v1593 = vadd.f32 %v1591, %v1592
      %v1594 = vsel %vm1063, %v1381, 0.0
      %v1595 = vrot.slane %v1594, 4
      %v1596 = vadd.f32 %v1594, %v1595
      %v1597 = vrot.slane %v1596, 2
      %v1598 = vadd.f32 %v1596, %v1597
      %v1599 = vrot.slane %v1598, 1
      %v1600 = vadd.f32 %v1598, %v1599
      %v1601 = vsel %vm1063, %v1383, 0.0
      %v1602 = vrot.slane %v1601, 4
      %v1603 = vadd.f32 %v1601, %v1602
      %v1604 = vrot.slane %v1603, 2
      %v1605 = vadd.f32 %v1603, %v1604
      %v1606 = vrot.slane %v1605, 1
      %v1607 = vadd.f32 %v1605, %v1606
      %v1608 = vrcp.pop %v1390
      %v1609 = vrcp.pop %v1397
      %v1610 = vrcp.pop %v1404
      %v1611 = vrcp.pop %v1411
      %v1612 = vrcp.pop %v1418
      %v1613 = vrcp.pop %v1425
      %v1614 = vrcp.pop %v1432
      %v1615 = vrcp.pop %v1439
      %v1616 = vrcp.pop %v1446
      %v1617 = vrcp.pop %v1453
      %v1618 = vrcp.pop %v1460
      %v1619 = vrcp.pop %v1467
      %v1620 = vrcp.pop %v1474
      %v1621 = vrcp.pop %v1481
      %v1622 = vrcp.pop %v1488
      %v1623 = vrcp.pop %v1495
      %v1624 = vrcp.pop %v1502
      %v1625 = vrcp.pop %v1509
      %v1626 = vrcp.pop %v1516
      %v1627 = vrcp.pop %v1523
      %v1628 = vrcp.pop %v1530
      %v1629 = vrcp.pop %v1537
      %v1630 = vrcp.pop %v1544
      %v1631 = vrcp.pop %v1551
      %v1632 = vrcp.pop %v1558
      %v1633 = vrcp.pop %v1565
      %v1634 = vrcp.pop %v1572
      %v1635 = vrcp.pop %v1579
      %v1636 = vrcp.pop %v1586
      %v1637 = vrcp.pop %v1593
      %v1638 = vrcp.pop %v1600
      %v1639 = vrcp.pop %v1607
      %v1640 = vmul.f32 %v1321, %v1608
      %v1641 = vmul.f32 %v1323, %v1609
      %v1642 = vmul.f32 %v1325, %v1610
      %v1643 = vmul.f32 %v1327, %v1611
      %v1644 = vmul.f32 %v1329, %v1612
      %v1645 = vmul.f32 %v1331, %v1613
      %v1646 = vmul.f32 %v1333, %v1614
      %v1647 = vmul.f32 %v1335, %v1615
      %v1648 = vmul.f32 %v1337, %v1616
      %v1649 = vmul.f32 %v1339, %v1617
      %v1650 = vmul.f32 %v1341, %v1618
      %v1651 = vmul.f32 %v1343, %v1619
      %v1652 = vmul.f32 %v1345, %v1620
      %v1653 = vmul.f32 %v1347, %v1621
      %v1654 = vmul.f32 %v1349, %v1622
      %v1655 = vmul.f32 %v1351, %v1623
      %v1656 = vmul.f32 %v1353, %v1624
      %v1657 = vmul.f32 %v1355, %v1625
      %v1658 = vmul.f32 %v1357, %v1626
      %v1659 = vmul.f32 %v1359, %v1627
      %v1660 = vmul.f32 %v1361, %v1628
      %v1661 = vmul.f32 %v1363, %v1629
      %v1662 = vmul.f32 %v1365, %v1630
      %v1663 = vmul.f32 %v1367, %v1631
      %v1664 = vmul.f32 %v1369, %v1632
      %v1665 = vmul.f32 %v1371, %v1633
      %v1666 = vmul.f32 %v1373, %v1634
      %v1667 = vmul.f32 %v1375, %v1635
      %v1668 = vmul.f32 %v1377, %v1636
      %v1669 = vmul.f32 %v1379, %v1637
      %v1670 = vmul.f32 %v1381, %v1638
      %v1671 = vmul.f32 %v1383, %v1639
      %v1672 = vmul.f32 %v937, %v1640
      %v1673 = vmul.f32 %v940, %v1641
      %v1674 = vmul.f32 %v945, %v1642
      %v1675 = vmul.f32 %v948, %v1643
      %v1676 = vmul.f32 %v953, %v1644
      %v1677 = vmul.f32 %v956, %v1645
      %v1678 = vmul.f32 %v961, %v1646
      %v1679 = vmul.f32 %v964, %v1647
      %v1680 = vmul.f32 %v969, %v1648
      %v1681 = vmul.f32 %v972, %v1649
      %v1682 = vmul.f32 %v977, %v1650
      %v1683 = vmul.f32 %v980, %v1651
      %v1684 = vmul.f32 %v985, %v1652
      %v1685 = vmul.f32 %v988, %v1653
      %v1686 = vmul.f32 %v993, %v1654
      %v1687 = vmul.f32 %v996, %v1655
      %v1688 = vmul.f32 %v1001, %v1656
      %v1689 = vmul.f32 %v1004, %v1657
      %v1690 = vmul.f32 %v1009, %v1658
      %v1691 = vmul.f32 %v1012, %v1659
      %v1692 = vmul.f32 %v1017, %v1660
      %v1693 = vmul.f32 %v1020, %v1661
      %v1694 = vmul.f32 %v1025, %v1662
      %v1695 = vmul.f32 %v1028, %v1663
      %v1696 = vmul.f32 %v1033, %v1664
      %v1697 = vmul.f32 %v1036, %v1665
      %v1698 = vmul.f32 %v1041, %v1666
      %v1699 = vmul.f32 %v1044, %v1667
      %v1700 = vmul.f32 %v1049, %v1668
      %v1701 = vmul.f32 %v1052, %v1669
      %v1702 = vmul.f32 %v1057, %v1670
      %v1703 = vmul.f32 %v1060, %v1671
      %v1704 = vsel %vm1063, %v1672, 0.0
      %v1705 = vrot.slane %v1704, 4
      %v1706 = vadd.f32 %v1704, %v1705
      %v1707 = vrot.slane %v1706, 2
      %v1708 = vadd.f32 %v1706, %v1707
      %v1709 = vrot.slane %v1708, 1
      %v1710 = vadd.f32 %v1708, %v1709
      %v1711 = vsel %vm1063, %v1673, 0.0
      %v1712 = vrot.slane %v1711, 4
      %v1713 = vadd.f32 %v1711, %v1712
      %v1714 = vrot.slane %v1713, 2
      %v1715 = vadd.f32 %v1713, %v1714
      %v1716 = vrot.slane %v1715, 1
      %v1717 = vadd.f32 %v1715, %v1716
      %v1718 = vsel %vm1063, %v1674, 0.0
      %v1719 = vrot.slane %v1718, 4
      %v1720 = vadd.f32 %v1718, %v1719
      %v1721 = vrot.slane %v1720, 2
      %v1722 = vadd.f32 %v1720, %v1721
      %v1723 = vrot.slane %v1722, 1
      %v1724 = vadd.f32 %v1722, %v1723
      %v1725 = vsel %vm1063, %v1675, 0.0
      %v1726 = vrot.slane %v1725, 4
      %v1727 = vadd.f32 %v1725, %v1726
      %v1728 = vrot.slane %v1727, 2
      %v1729 = vadd.f32 %v1727, %v1728
      %v1730 = vrot.slane %v1729, 1
      %v1731 = vadd.f32 %v1729, %v1730
      %v1732 = vsel %vm1063, %v1676, 0.0
      %v1733 = vrot.slane %v1732, 4
      %v1734 = vadd.f32 %v1732, %v1733
      %v1735 = vrot.slane %v1734, 2
      %v1736 = vadd.f32 %v1734, %v1735
      %v1737 = vrot.slane %v1736, 1
      %v1738 = vadd.f32 %v1736, %v1737
      %v1739 = vsel %vm1063, %v1677, 0.0
      %v1740 = vrot.slane %v1739, 4
      %v1741 = vadd.f32 %v1739, %v1740
      %v1742 = vrot.slane %v1741, 2
      %v1743 = vadd.f32 %v1741, %v1742
      %v1744 = vrot.slane %v1743, 1
      %v1745 = vadd.f32 %v1743, %v1744
      %v1746 = vsel %vm1063, %v1678, 0.0
      %v1747 = vrot.slane %v1746, 4
      %v1748 = vadd.f32 %v1746, %v1747
      %v1749 = vrot.slane %v1748, 2
      %v1750 = vadd.f32 %v1748, %v1749
      %v1751 = vrot.slane %v1750, 1
      %v1752 = vadd.f32 %v1750, %v1751
      %v1753 = vsel %vm1063, %v1679, 0.0
      %v1754 = vrot.slane %v1753, 4
      %v1755 = vadd.f32 %v1753, %v1754
      %v1756 = vrot.slane %v1755, 2
      %v1757 = vadd.f32 %v1755, %v1756
      %v1758 = vrot.slane %v1757, 1
      %v1759 = vadd.f32 %v1757, %v1758
      %v1760 = vsel %vm1063, %v1680, 0.0
      %v1761 = vrot.slane %v1760, 4
      %v1762 = vadd.f32 %v1760, %v1761
      %v1763 = vrot.slane %v1762, 2
      %v1764 = vadd.f32 %v1762, %v1763
      %v1765 = vrot.slane %v1764, 1
      %v1766 = vadd.f32 %v1764, %v1765
      %v1767 = vsel %vm1063, %v1681, 0.0
      %v1768 = vrot.slane %v1767, 4
      %v1769 = vadd.f32 %v1767, %v1768
      %v1770 = vrot.slane %v1769, 2
      %v1771 = vadd.f32 %v1769, %v1770
      %v1772 = vrot.slane %v1771, 1
      %v1773 = vadd.f32 %v1771, %v1772
      %v1774 = vsel %vm1063, %v1682, 0.0
      %v1775 = vrot.slane %v1774, 4
      %v1776 = vadd.f32 %v1774, %v1775
      %v1777 = vrot.slane %v1776, 2
      %v1778 = vadd.f32 %v1776, %v1777
      %v1779 = vrot.slane %v1778, 1
      %v1780 = vadd.f32 %v1778, %v1779
      %v1781 = vsel %vm1063, %v1683, 0.0
      %v1782 = vrot.slane %v1781, 4
      %v1783 = vadd.f32 %v1781, %v1782
      %v1784 = vrot.slane %v1783, 2
      %v1785 = vadd.f32 %v1783, %v1784
      %v1786 = vrot.slane %v1785, 1
      %v1787 = vadd.f32 %v1785, %v1786
      %v1788 = vsel %vm1063, %v1684, 0.0
      %v1789 = vrot.slane %v1788, 4
      %v1790 = vadd.f32 %v1788, %v1789
      %v1791 = vrot.slane %v1790, 2
      %v1792 = vadd.f32 %v1790, %v1791
      %v1793 = vrot.slane %v1792, 1
      %v1794 = vadd.f32 %v1792, %v1793
      %v1795 = vsel %vm1063, %v1685, 0.0
      %v1796 = vrot.slane %v1795, 4
      %v1797 = vadd.f32 %v1795, %v1796
      %v1798 = vrot.slane %v1797, 2
      %v1799 = vadd.f32 %v1797, %v1798
      %v1800 = vrot.slane %v1799, 1
      %v1801 = vadd.f32 %v1799, %v1800
      %v1802 = vsel %vm1063, %v1686, 0.0
      %v1803 = vrot.slane %v1802, 4
      %v1804 = vadd.f32 %v1802, %v1803
      %v1805 = vrot.slane %v1804, 2
      %v1806 = vadd.f32 %v1804, %v1805
      %v1807 = vrot.slane %v1806, 1
      %v1808 = vadd.f32 %v1806, %v1807
      %v1809 = vsel %vm1063, %v1687, 0.0
      %v1810 = vrot.slane %v1809, 4
      %v1811 = vadd.f32 %v1809, %v1810
      %v1812 = vrot.slane %v1811, 2
      %v1813 = vadd.f32 %v1811, %v1812
      %v1814 = vrot.slane %v1813, 1
      %v1815 = vadd.f32 %v1813, %v1814
      %v1816 = vsel %vm1063, %v1688, 0.0
      %v1817 = vrot.slane %v1816, 4
      %v1818 = vadd.f32 %v1816, %v1817
      %v1819 = vrot.slane %v1818, 2
      %v1820 = vadd.f32 %v1818, %v1819
      %v1821 = vrot.slane %v1820, 1
      %v1822 = vadd.f32 %v1820, %v1821
      %v1823 = vsel %vm1063, %v1689, 0.0
      %v1824 = vrot.slane %v1823, 4
      %v1825 = vadd.f32 %v1823, %v1824
      %v1826 = vrot.slane %v1825, 2
      %v1827 = vadd.f32 %v1825, %v1826
      %v1828 = vrot.slane %v1827, 1
      %v1829 = vadd.f32 %v1827, %v1828
      %v1830 = vsel %vm1063, %v1690, 0.0
      %v1831 = vrot.slane %v1830, 4
      %v1832 = vadd.f32 %v1830, %v1831
      %v1833 = vrot.slane %v1832, 2
      %v1834 = vadd.f32 %v1832, %v1833
      %v1835 = vrot.slane %v1834, 1
      %v1836 = vadd.f32 %v1834, %v1835
      %v1837 = vsel %vm1063, %v1691, 0.0
      %v1838 = vrot.slane %v1837, 4
      %v1839 = vadd.f32 %v1837, %v1838
      %v1840 = vrot.slane %v1839, 2
      %v1841 = vadd.f32 %v1839, %v1840
      %v1842 = vrot.slane %v1841, 1
      %v1843 = vadd.f32 %v1841, %v1842
      %v1844 = vsel %vm1063, %v1692, 0.0
      %v1845 = vrot.slane %v1844, 4
      %v1846 = vadd.f32 %v1844, %v1845
      %v1847 = vrot.slane %v1846, 2
      %v1848 = vadd.f32 %v1846, %v1847
      %v1849 = vrot.slane %v1848, 1
      %v1850 = vadd.f32 %v1848, %v1849
      %v1851 = vsel %vm1063, %v1693, 0.0
      %v1852 = vrot.slane %v1851, 4
      %v1853 = vadd.f32 %v1851, %v1852
      %v1854 = vrot.slane %v1853, 2
      %v1855 = vadd.f32 %v1853, %v1854
      %v1856 = vrot.slane %v1855, 1
      %v1857 = vadd.f32 %v1855, %v1856
      %v1858 = vsel %vm1063, %v1694, 0.0
      %v1859 = vrot.slane %v1858, 4
      %v1860 = vadd.f32 %v1858, %v1859
      %v1861 = vrot.slane %v1860, 2
      %v1862 = vadd.f32 %v1860, %v1861
      %v1863 = vrot.slane %v1862, 1
      %v1864 = vadd.f32 %v1862, %v1863
      %v1865 = vsel %vm1063, %v1695, 0.0
      %v1866 = vrot.slane %v1865, 4
      %v1867 = vadd.f32 %v1865, %v1866
      %v1868 = vrot.slane %v1867, 2
      %v1869 = vadd.f32 %v1867, %v1868
      %v1870 = vrot.slane %v1869, 1
      %v1871 = vadd.f32 %v1869, %v1870
      %v1872 = vsel %vm1063, %v1696, 0.0
      %v1873 = vrot.slane %v1872, 4
      %v1874 = vadd.f32 %v1872, %v1873
      %v1875 = vrot.slane %v1874, 2
      %v1876 = vadd.f32 %v1874, %v1875
      %v1877 = vrot.slane %v1876, 1
      %v1878 = vadd.f32 %v1876, %v1877
      %v1879 = vsel %vm1063, %v1697, 0.0
      %v1880 = vrot.slane %v1879, 4
      %v1881 = vadd.f32 %v1879, %v1880
      %v1882 = vrot.slane %v1881, 2
      %v1883 = vadd.f32 %v1881, %v1882
      %v1884 = vrot.slane %v1883, 1
      %v1885 = vadd.f32 %v1883, %v1884
      %v1886 = vsel %vm1063, %v1698, 0.0
      %v1887 = vrot.slane %v1886, 4
      %v1888 = vadd.f32 %v1886, %v1887
      %v1889 = vrot.slane %v1888, 2
      %v1890 = vadd.f32 %v1888, %v1889
      %v1891 = vrot.slane %v1890, 1
      %v1892 = vadd.f32 %v1890, %v1891
      %v1893 = vsel %vm1063, %v1699, 0.0
      %v1894 = vrot.slane %v1893, 4
      %v1895 = vadd.f32 %v1893, %v1894
      %v1896 = vrot.slane %v1895, 2
      %v1897 = vadd.f32 %v1895, %v1896
      %v1898 = vrot.slane %v1897, 1
      %v1899 = vadd.f32 %v1897, %v1898
      %v1900 = vsel %vm1063, %v1700, 0.0
      %v1901 = vrot.slane %v1900, 4
      %v1902 = vadd.f32 %v1900, %v1901
      %v1903 = vrot.slane %v1902, 2
      %v1904 = vadd.f32 %v1902, %v1903
      %v1905 = vrot.slane %v1904, 1
      %v1906 = vadd.f32 %v1904, %v1905
      %v1907 = vsel %vm1063, %v1701, 0.0
      %v1908 = vrot.slane %v1907, 4
      %v1909 = vadd.f32 %v1907, %v1908
      %v1910 = vrot.slane %v1909, 2
      %v1911 = vadd.f32 %v1909, %v1910
      %v1912 = vrot.slane %v1911, 1
      %v1913 = vadd.f32 %v1911, %v1912
      %v1914 = vsel %vm1063, %v1702, 0.0
      %v1915 = vrot.slane %v1914, 4
      %v1916 = vadd.f32 %v1914, %v1915
      %v1917 = vrot.slane %v1916, 2
      %v1918 = vadd.f32 %v1916, %v1917
      %v1919 = vrot.slane %v1918, 1
      %v1920 = vadd.f32 %v1918, %v1919
      %v1921 = vsel %vm1063, %v1703, 0.0
      %v1922 = vrot.slane %v1921, 4
      %v1923 = vadd.f32 %v1921, %v1922
      %v1924 = vrot.slane %v1923, 2
      %v1925 = vadd.f32 %v1923, %v1924
      %v1926 = vrot.slane %v1925, 1
      %v1927 = vadd.f32 %v1925, %v1926
      %v1928 = vpack.c.bf16 %v1710, %v1710
      %v1929 = vpack.c.bf16 %v1717, %v1717
      %v1930 = vpack.c.bf16 %v1724, %v1724
      %v1931 = vpack.c.bf16 %v1731, %v1731
      %v1932 = vpack.c.bf16 %v1738, %v1738
      %v1933 = vpack.c.bf16 %v1745, %v1745
      %v1934 = vpack.c.bf16 %v1752, %v1752
      %v1935 = vpack.c.bf16 %v1759, %v1759
      %v1936 = vpack.c.bf16 %v1766, %v1766
      %v1937 = vpack.c.bf16 %v1773, %v1773
      %v1938 = vpack.c.bf16 %v1780, %v1780
      %v1939 = vpack.c.bf16 %v1787, %v1787
      %v1940 = vpack.c.bf16 %v1794, %v1794
      %v1941 = vpack.c.bf16 %v1801, %v1801
      %v1942 = vpack.c.bf16 %v1808, %v1808
      %v1943 = vpack.c.bf16 %v1815, %v1815
      %v1944 = vpack.c.bf16 %v1822, %v1822
      %v1945 = vpack.c.bf16 %v1829, %v1829
      %v1946 = vpack.c.bf16 %v1836, %v1836
      %v1947 = vpack.c.bf16 %v1843, %v1843
      %v1948 = vpack.c.bf16 %v1850, %v1850
      %v1949 = vpack.c.bf16 %v1857, %v1857
      %v1950 = vpack.c.bf16 %v1864, %v1864
      %v1951 = vpack.c.bf16 %v1871, %v1871
      %v1952 = vpack.c.bf16 %v1878, %v1878
      %v1953 = vpack.c.bf16 %v1885, %v1885
      %v1954 = vpack.c.bf16 %v1892, %v1892
      %v1955 = vpack.c.bf16 %v1899, %v1899
      %v1956 = vpack.c.bf16 %v1906, %v1906
      %v1957 = vpack.c.bf16 %v1913, %v1913
      %v1958 = vpack.c.bf16 %v1920, %v1920
      %v1959 = vpack.c.bf16 %v1927, %v1927
      %v1960 = vld [vmem:[%s5] sm:$0xf]
      %v1961 = vld [vmem:[%s5 + $0x4] sm:$0xf]
      %v1994 = vunpack.c.l.b16 %v1928
      %v1995 = vunpack.c.l.b16 %v1929
      %v1996 = vunpack.c.l.b16 %v1930
      %v1997 = vunpack.c.l.b16 %v1931
      %v1998 = vunpack.c.l.b16 %v1932
      %v1999 = vunpack.c.l.b16 %v1933
      %v2000 = vunpack.c.l.b16 %v1934
      %v2001 = vunpack.c.l.b16 %v1935
      %v2002 = vunpack.c.l.b16 %v1936
      %v2003 = vunpack.c.l.b16 %v1937
      %v2004 = vunpack.c.l.b16 %v1938
      %v2005 = vunpack.c.l.b16 %v1939
      %v2006 = vunpack.c.l.b16 %v1940
      %v2007 = vunpack.c.l.b16 %v1941
      %v2008 = vunpack.c.l.b16 %v1942
      %v2009 = vunpack.c.l.b16 %v1943
      %v2010 = vunpack.c.l.b16 %v1944
      %v2011 = vunpack.c.l.b16 %v1945
      %v2012 = vunpack.c.l.b16 %v1946
      %v2013 = vunpack.c.l.b16 %v1947
      %v2014 = vunpack.c.l.b16 %v1948
      %v2015 = vunpack.c.l.b16 %v1949
      %v2016 = vunpack.c.l.b16 %v1950
      %v2017 = vunpack.c.l.b16 %v1951
      %v2018 = vunpack.c.l.b16 %v1952
      %v2019 = vunpack.c.l.b16 %v1953
      %v2020 = vunpack.c.l.b16 %v1954
      %v2021 = vunpack.c.l.b16 %v1955
      %v2022 = vunpack.c.l.b16 %v1956
      %v2023 = vunpack.c.l.b16 %v1957
      %v2024 = vunpack.c.l.b16 %v1958
      %v2025 = vunpack.c.l.b16 %v1959
      %vm2026 = vcmask 1041409
      %v2027 = vsel %vm2026, %v1995, %v1994
      %vm2028 = vcmask 1042434
      %v2029 = vsel %vm2028, %v1996, %v2027
      %vm2030 = vcmask 1043459
      %v2031 = vsel %vm2030, %v1997, %v2029
      %vm2032 = vcmask 1044484
      %v2033 = vsel %vm2032, %v1998, %v2031
      %vm2034 = vcmask 1045509
      %v2035 = vsel %vm2034, %v1999, %v2033
      %vm2036 = vcmask 1046534
      %v2037 = vsel %vm2036, %v2000, %v2035
      %vm2038 = vcmask 1047559
      %v2039 = vsel %vm2038, %v2001, %v2037
      %v2040 = vsel %vm2026, %v2003, %v2002
      %v2041 = vsel %vm2028, %v2004, %v2040
      %v2042 = vsel %vm2030, %v2005, %v2041
      %v2043 = vsel %vm2032, %v2006, %v2042
      %v2044 = vsel %vm2034, %v2007, %v2043
      %v2045 = vsel %vm2036, %v2008, %v2044
      %v2046 = vsel %vm2038, %v2009, %v2045
      %v2047 = vsel %vm2026, %v2011, %v2010
      %v2048 = vsel %vm2028, %v2012, %v2047
      %v2049 = vsel %vm2030, %v2013, %v2048
      %v2050 = vsel %vm2032, %v2014, %v2049
      %v2051 = vsel %vm2034, %v2015, %v2050
      %v2052 = vsel %vm2036, %v2016, %v2051
      %v2053 = vsel %vm2038, %v2017, %v2052
      %v2054 = vsel %vm2026, %v2019, %v2018
      %v2055 = vsel %vm2028, %v2020, %v2054
      %v2056 = vsel %vm2030, %v2021, %v2055
      %v2057 = vsel %vm2032, %v2022, %v2056
      %v2058 = vsel %vm2034, %v2023, %v2057
      %v2059 = vsel %vm2036, %v2024, %v2058
      %v2060 = vsel %vm2038, %v2025, %v2059
      %v2061 = vpack.c.b16 %v2046, %v2039
      %v2062 = vpack.c.b16 %v2060, %v2053
      %v2065 = vunpack.c.l.b16 %v1960
      %v2066 = vunpack.c.l.b16 %v1961
      %v2067 = vpack.c.b16 %v2066, %v2065
      %v2070 = vsel %vm1063, %v2061, 0
      %v2073 = vsel %vm1063, %v2062, 0
      %2075 = vmatprep.subr.bf16.mxu0 0
      %2076 = vmatpush1.bf16.msra.mxu0 0
      %2077 = vmatprep.subr.bf16.mxu0 0
      %2078 = vmatpush1.bf16.msra.mxu0 0
      %2079 = vmatprep.subr.bf16.mxu0 0
      %2080 = vmatpush1.bf16.msra.mxu0 0
      %2081 = vmatprep.subr.bf16.mxu0 0
      %2082 = vmatpush1.bf16.msra.mxu0 0
      %2083 = vmatprep.subr.bf16.mxu0 0
      %2084 = vmatpush1.bf16.msra.mxu0 0
      %2085 = vmatprep.subr.bf16.mxu0 0
      %2086 = vmatpush1.bf16.msra.mxu0 0
      %2087 = vmatprep.subr.bf16.mxu0 0
      %2088 = vmatpush1.bf16.msra.mxu0 0
      %2089 = vmatprep.subr.bf16.mxu0 0
      %2090 = vmatpush1.bf16.msra.mxu0 %v2067
      %2091 = vmatprep.subr.bf16.mxu0 0
      %2092 = vmatpush2.bf16.msra.mxu0 0
      %2093 = vmatprep.subr.bf16.mxu0 0
      %2094 = vmatpush2.bf16.msra.mxu0 0
      %2095 = vmatprep.subr.bf16.mxu0 0
      %2096 = vmatpush2.bf16.msra.mxu0 0
      %2097 = vmatprep.subr.bf16.mxu0 0
      %2098 = vmatpush2.bf16.msra.mxu0 0
      %2099 = vmatprep.subr.bf16.mxu0 0
      %2100 = vmatpush2.bf16.msra.mxu0 0
      %2101 = vmatprep.subr.bf16.mxu0 0
      %2102 = vmatpush2.bf16.msra.mxu0 0
      %2103 = vmatprep.subr.bf16.mxu0 0
      %2104 = vmatpush2.bf16.msra.mxu0 0
      %2105 = vmatprep.subr.bf16.mxu0 0
      %2106 = vmatpush2.bf16.msra.mxu0 0
      %2107 = vmatprep.mubr.bf16.mxu0 0
      %2108 = vmatmul.mubr.bf16.gmra.mxu0 %v2070
      %v2109 = vpop.f32.mrf.mxu0
      %v2110 = vadd.f32 0.0, %v2109
      %v2111 = vpop.f32.mrf.mxu0
      %v2112 = vpop.f32.mrf.mxu0
      %v2113 = vadd.f32 0.0, %v2112
      %v2114 = vpop.f32.mrf.mxu0
      %2115 = vmatprep.mubr.bf16.mxu0 0
      %2116 = vmatmul.mubr.bf16.gmra.mxu0 %v2073
      %v2117 = vpop.f32.mrf.mxu0
      %v2118 = vadd.f32 0.0, %v2117
      %v2119 = vpop.f32.mrf.mxu0
      %v2120 = vpop.f32.mrf.mxu0
      %v2121 = vadd.f32 0.0, %v2120
      %v2122 = vpop.f32.mrf.mxu0
      %2123 = vdwg.mxu0
      %v2128 = vcombine.high %v2110, %v2110
      %v2130 = vunpack.c.l.s4 1966171168
      %v2131 = vunpack.c.0.s8 %v2130
      %v2132 = vlaneseq
      %v2133 = vshrl.u32 %v2132, 7
      %v2134 = vsub.s32 %v2131, %v2133
      %v2135 = vrot.slane %v2110, %v2134
      %v2137 = vunpack.c.l.s4 1966171168
      %v2138 = vunpack.c.0.s8 %v2137
      %v2139 = vlaneseq
      %v2140 = vshrl.u32 %v2139, 7
      %v2141 = vsub.s32 %v2138, %v2140
      %v2142 = vrot.slane %v2128, %v2141
      %v2143 = vcombine.high %v2135, %v2135
      %v2144 = vcombine.high %v2142, %v2142
      %v2146 = vunpack.c.l.s4 1966171168
      %v2147 = vunpack.c.0.s8 %v2146
      %v2148 = vlaneseq
      %v2149 = vshrl.u32 %v2148, 7
      %v2150 = vsub.s32 %v2147, %v2149
      %v2151 = vrot.slane %v2135, %v2150
      %v2153 = vunpack.c.l.s4 1966171168
      %v2154 = vunpack.c.0.s8 %v2153
      %v2155 = vlaneseq
      %v2156 = vshrl.u32 %v2155, 7
      %v2157 = vsub.s32 %v2154, %v2156
      %v2158 = vrot.slane %v2142, %v2157
      %v2160 = vunpack.c.l.s4 1966171168
      %v2161 = vunpack.c.0.s8 %v2160
      %v2162 = vlaneseq
      %v2163 = vshrl.u32 %v2162, 7
      %v2164 = vsub.s32 %v2161, %v2163
      %v2165 = vrot.slane %v2143, %v2164
      %v2167 = vunpack.c.l.s4 1966171168
      %v2168 = vunpack.c.0.s8 %v2167
      %v2169 = vlaneseq
      %v2170 = vshrl.u32 %v2169, 7
      %v2171 = vsub.s32 %v2168, %v2170
      %v2172 = vrot.slane %v2144, %v2171
      %v2173 = vcombine.high %v2151, %v2151
      %v2174 = vcombine.high %v2158, %v2158
      %v2175 = vcombine.high %v2165, %v2165
      %v2176 = vcombine.high %v2172, %v2172
      %v2177 = vcombine.high %v2113, %v2113
      %v2179 = vunpack.c.l.s4 1966171168
      %v2180 = vunpack.c.0.s8 %v2179
      %v2181 = vlaneseq
      %v2182 = vshrl.u32 %v2181, 7
      %v2183 = vsub.s32 %v2180, %v2182
      %v2184 = vrot.slane %v2113, %v2183
      %v2186 = vunpack.c.l.s4 1966171168
      %v2187 = vunpack.c.0.s8 %v2186
      %v2188 = vlaneseq
      %v2189 = vshrl.u32 %v2188, 7
      %v2190 = vsub.s32 %v2187, %v2189
      %v2191 = vrot.slane %v2177, %v2190
      %v2192 = vcombine.high %v2184, %v2184
      %v2193 = vcombine.high %v2191, %v2191
      %v2195 = vunpack.c.l.s4 1966171168
      %v2196 = vunpack.c.0.s8 %v2195
      %v2197 = vlaneseq
      %v2198 = vshrl.u32 %v2197, 7
      %v2199 = vsub.s32 %v2196, %v2198
      %v2200 = vrot.slane %v2184, %v2199
      %v2202 = vunpack.c.l.s4 1966171168
      %v2203 = vunpack.c.0.s8 %v2202
      %v2204 = vlaneseq
      %v2205 = vshrl.u32 %v2204, 7
      %v2206 = vsub.s32 %v2203, %v2205
      %v2207 = vrot.slane %v2191, %v2206
      %v2209 = vunpack.c.l.s4 1966171168
      %v2210 = vunpack.c.0.s8 %v2209
      %v2211 = vlaneseq
      %v2212 = vshrl.u32 %v2211, 7
      %v2213 = vsub.s32 %v2210, %v2212
      %v2214 = vrot.slane %v2192, %v2213
      %v2216 = vunpack.c.l.s4 1966171168
      %v2217 = vunpack.c.0.s8 %v2216
      %v2218 = vlaneseq
      %v2219 = vshrl.u32 %v2218, 7
      %v2220 = vsub.s32 %v2217, %v2219
      %v2221 = vrot.slane %v2193, %v2220
      %v2222 = vcombine.high %v2200, %v2200
      %v2223 = vcombine.high %v2207, %v2207
      %v2224 = vcombine.high %v2214, %v2214
      %v2225 = vcombine.high %v2221, %v2221
      %v2226 = vcombine.high %v2118, %v2118
      %v2228 = vunpack.c.l.s4 1966171168
      %v2229 = vunpack.c.0.s8 %v2228
      %v2230 = vlaneseq
      %v2231 = vshrl.u32 %v2230, 7
      %v2232 = vsub.s32 %v2229, %v2231
      %v2233 = vrot.slane %v2118, %v2232
      %v2235 = vunpack.c.l.s4 1966171168
      %v2236 = vunpack.c.0.s8 %v2235
      %v2237 = vlaneseq
      %v2238 = vshrl.u32 %v2237, 7
      %v2239 = vsub.s32 %v2236, %v2238
      %v2240 = vrot.slane %v2226, %v2239
      %v2241 = vcombine.high %v2233, %v2233
      %v2242 = vcombine.high %v2240, %v2240
      %v2244 = vunpack.c.l.s4 1966171168
      %v2245 = vunpack.c.0.s8 %v2244
      %v2246 = vlaneseq
      %v2247 = vshrl.u32 %v2246, 7
      %v2248 = vsub.s32 %v2245, %v2247
      %v2249 = vrot.slane %v2233, %v2248
      %v2251 = vunpack.c.l.s4 1966171168
      %v2252 = vunpack.c.0.s8 %v2251
      %v2253 = vlaneseq
      %v2254 = vshrl.u32 %v2253, 7
      %v2255 = vsub.s32 %v2252, %v2254
      %v2256 = vrot.slane %v2240, %v2255
      %v2258 = vunpack.c.l.s4 1966171168
      %v2259 = vunpack.c.0.s8 %v2258
      %v2260 = vlaneseq
      %v2261 = vshrl.u32 %v2260, 7
      %v2262 = vsub.s32 %v2259, %v2261
      %v2263 = vrot.slane %v2241, %v2262
      %v2265 = vunpack.c.l.s4 1966171168
      %v2266 = vunpack.c.0.s8 %v2265
      %v2267 = vlaneseq
      %v2268 = vshrl.u32 %v2267, 7
      %v2269 = vsub.s32 %v2266, %v2268
      %v2270 = vrot.slane %v2242, %v2269
      %v2271 = vcombine.high %v2249, %v2249
      %v2272 = vcombine.high %v2256, %v2256
      %v2273 = vcombine.high %v2263, %v2263
      %v2274 = vcombine.high %v2270, %v2270
      %v2275 = vcombine.high %v2121, %v2121
      %v2277 = vunpack.c.l.s4 1966171168
      %v2278 = vunpack.c.0.s8 %v2277
      %v2279 = vlaneseq
      %v2280 = vshrl.u32 %v2279, 7
      %v2281 = vsub.s32 %v2278, %v2280
      %v2282 = vrot.slane %v2121, %v2281
      %v2284 = vunpack.c.l.s4 1966171168
      %v2285 = vunpack.c.0.s8 %v2284
      %v2286 = vlaneseq
      %v2287 = vshrl.u32 %v2286, 7
      %v2288 = vsub.s32 %v2285, %v2287
      %v2289 = vrot.slane %v2275, %v2288
      %v2290 = vcombine.high %v2282, %v2282
      %v2291 = vcombine.high %v2289, %v2289
      %v2293 = vunpack.c.l.s4 1966171168
      %v2294 = vunpack.c.0.s8 %v2293
      %v2295 = vlaneseq
      %v2296 = vshrl.u32 %v2295, 7
      %v2297 = vsub.s32 %v2294, %v2296
      %v2298 = vrot.slane %v2282, %v2297
      %v2300 = vunpack.c.l.s4 1966171168
      %v2301 = vunpack.c.0.s8 %v2300
      %v2302 = vlaneseq
      %v2303 = vshrl.u32 %v2302, 7
      %v2304 = vsub.s32 %v2301, %v2303
      %v2305 = vrot.slane %v2289, %v2304
      %v2307 = vunpack.c.l.s4 1966171168
      %v2308 = vunpack.c.0.s8 %v2307
      %v2309 = vlaneseq
      %v2310 = vshrl.u32 %v2309, 7
      %v2311 = vsub.s32 %v2308, %v2310
      %v2312 = vrot.slane %v2290, %v2311
      %v2314 = vunpack.c.l.s4 1966171168
      %v2315 = vunpack.c.0.s8 %v2314
      %v2316 = vlaneseq
      %v2317 = vshrl.u32 %v2316, 7
      %v2318 = vsub.s32 %v2315, %v2317
      %v2319 = vrot.slane %v2291, %v2318
      %v2320 = vcombine.high %v2298, %v2298
      %v2321 = vcombine.high %v2305, %v2305
      %v2322 = vcombine.high %v2312, %v2312
      %v2323 = vcombine.high %v2319, %v2319
      %v2324 = vlaneseq
      %v2325 = vshrl.u32 %v2324, 7
      %v2326 = vsub.s32 0, %v2325
      %v2327 = vrot.slane %v2151, %v2326
      %v2328 = vlaneseq
      %v2329 = vshrl.u32 %v2328, 7
      %v2330 = vsub.s32 0, %v2329
      %v2331 = vrot.slane %v2165, %v2330
      %v2332 = vlaneseq
      %v2333 = vshrl.u32 %v2332, 7
      %v2334 = vsub.s32 0, %v2333
      %v2335 = vrot.slane %v2173, %v2334
      %v2336 = vlaneseq
      %v2337 = vshrl.u32 %v2336, 7
      %v2338 = vsub.s32 0, %v2337
      %v2339 = vrot.slane %v2175, %v2338
      %v2340 = vlaneseq
      %v2341 = vshrl.u32 %v2340, 7
      %v2342 = vsub.s32 0, %v2341
      %v2343 = vrot.slane %v2158, %v2342
      %v2344 = vlaneseq
      %v2345 = vshrl.u32 %v2344, 7
      %v2346 = vsub.s32 0, %v2345
      %v2347 = vrot.slane %v2172, %v2346
      %v2348 = vlaneseq
      %v2349 = vshrl.u32 %v2348, 7
      %v2350 = vsub.s32 0, %v2349
      %v2351 = vrot.slane %v2174, %v2350
      %v2352 = vlaneseq
      %v2353 = vshrl.u32 %v2352, 7
      %v2354 = vsub.s32 0, %v2353
      %v2355 = vrot.slane %v2176, %v2354
      %v2356 = vlaneseq
      %v2357 = vshrl.u32 %v2356, 7
      %v2358 = vsub.s32 0, %v2357
      %v2359 = vrot.slane %v2200, %v2358
      %v2360 = vlaneseq
      %v2361 = vshrl.u32 %v2360, 7
      %v2362 = vsub.s32 0, %v2361
      %v2363 = vrot.slane %v2214, %v2362
      %v2364 = vlaneseq
      %v2365 = vshrl.u32 %v2364, 7
      %v2366 = vsub.s32 0, %v2365
      %v2367 = vrot.slane %v2222, %v2366
      %v2368 = vlaneseq
      %v2369 = vshrl.u32 %v2368, 7
      %v2370 = vsub.s32 0, %v2369
      %v2371 = vrot.slane %v2224, %v2370
      %v2372 = vlaneseq
      %v2373 = vshrl.u32 %v2372, 7
      %v2374 = vsub.s32 0, %v2373
      %v2375 = vrot.slane %v2207, %v2374
      %v2376 = vlaneseq
      %v2377 = vshrl.u32 %v2376, 7
      %v2378 = vsub.s32 0, %v2377
      %v2379 = vrot.slane %v2221, %v2378
      %v2380 = vlaneseq
      %v2381 = vshrl.u32 %v2380, 7
      %v2382 = vsub.s32 0, %v2381
      %v2383 = vrot.slane %v2223, %v2382
      %v2384 = vlaneseq
      %v2385 = vshrl.u32 %v2384, 7
      %v2386 = vsub.s32 0, %v2385
      %v2387 = vrot.slane %v2225, %v2386
      %v2388 = vlaneseq
      %v2389 = vshrl.u32 %v2388, 7
      %v2390 = vsub.s32 0, %v2389
      %v2391 = vrot.slane %v2249, %v2390
      %v2392 = vlaneseq
      %v2393 = vshrl.u32 %v2392, 7
      %v2394 = vsub.s32 0, %v2393
      %v2395 = vrot.slane %v2263, %v2394
      %v2396 = vlaneseq
      %v2397 = vshrl.u32 %v2396, 7
      %v2398 = vsub.s32 0, %v2397
      %v2399 = vrot.slane %v2271, %v2398
      %v2400 = vlaneseq
      %v2401 = vshrl.u32 %v2400, 7
      %v2402 = vsub.s32 0, %v2401
      %v2403 = vrot.slane %v2273, %v2402
      %v2404 = vlaneseq
      %v2405 = vshrl.u32 %v2404, 7
      %v2406 = vsub.s32 0, %v2405
      %v2407 = vrot.slane %v2256, %v2406
      %v2408 = vlaneseq
      %v2409 = vshrl.u32 %v2408, 7
      %v2410 = vsub.s32 0, %v2409
      %v2411 = vrot.slane %v2270, %v2410
      %v2412 = vlaneseq
      %v2413 = vshrl.u32 %v2412, 7
      %v2414 = vsub.s32 0, %v2413
      %v2415 = vrot.slane %v2272, %v2414
      %v2416 = vlaneseq
      %v2417 = vshrl.u32 %v2416, 7
      %v2418 = vsub.s32 0, %v2417
      %v2419 = vrot.slane %v2274, %v2418
      %v2420 = vlaneseq
      %v2421 = vshrl.u32 %v2420, 7
      %v2422 = vsub.s32 0, %v2421
      %v2423 = vrot.slane %v2298, %v2422
      %v2424 = vlaneseq
      %v2425 = vshrl.u32 %v2424, 7
      %v2426 = vsub.s32 0, %v2425
      %v2427 = vrot.slane %v2312, %v2426
      %v2428 = vlaneseq
      %v2429 = vshrl.u32 %v2428, 7
      %v2430 = vsub.s32 0, %v2429
      %v2431 = vrot.slane %v2320, %v2430
      %v2432 = vlaneseq
      %v2433 = vshrl.u32 %v2432, 7
      %v2434 = vsub.s32 0, %v2433
      %v2435 = vrot.slane %v2322, %v2434
      %v2436 = vlaneseq
      %v2437 = vshrl.u32 %v2436, 7
      %v2438 = vsub.s32 0, %v2437
      %v2439 = vrot.slane %v2305, %v2438
      %v2440 = vlaneseq
      %v2441 = vshrl.u32 %v2440, 7
      %v2442 = vsub.s32 0, %v2441
      %v2443 = vrot.slane %v2319, %v2442
      %v2444 = vlaneseq
      %v2445 = vshrl.u32 %v2444, 7
      %v2446 = vsub.s32 0, %v2445
      %v2447 = vrot.slane %v2321, %v2446
      %v2448 = vlaneseq
      %v2449 = vshrl.u32 %v2448, 7
      %v2450 = vsub.s32 0, %v2449
      %v2451 = vrot.slane %v2323, %v2450
      %2452 = vrot.lane.b32.xlu0 %v2327, 32
      %v2453 = vpop.permute.xlu0 %2452
      %2454 = vrot.lane.b32.xlu0 %v2331, 32
      %v2455 = vpop.permute.xlu0 %2454
      %2456 = vrot.lane.b32.xlu0 %v2335, 32
      %v2457 = vpop.permute.xlu0 %2456
      %2458 = vrot.lane.b32.xlu0 %v2339, 32
      %v2459 = vpop.permute.xlu0 %2458
      %2460 = vrot.lane.b32.xlu0 %v2343, 32
      %v2461 = vpop.permute.xlu0 %2460
      %2462 = vrot.lane.b32.xlu0 %v2347, 32
      %v2463 = vpop.permute.xlu0 %2462
      %2464 = vrot.lane.b32.xlu0 %v2351, 32
      %v2465 = vpop.permute.xlu0 %2464
      %2466 = vrot.lane.b32.xlu0 %v2355, 32
      %v2467 = vpop.permute.xlu0 %2466
      %2468 = vrot.lane.b32.xlu0 %v2359, 32
      %v2469 = vpop.permute.xlu0 %2468
      %2470 = vrot.lane.b32.xlu0 %v2363, 32
      %v2471 = vpop.permute.xlu0 %2470
      %2472 = vrot.lane.b32.xlu0 %v2367, 32
      %v2473 = vpop.permute.xlu0 %2472
      %2474 = vrot.lane.b32.xlu0 %v2371, 32
      %v2475 = vpop.permute.xlu0 %2474
      %2476 = vrot.lane.b32.xlu0 %v2375, 32
      %v2477 = vpop.permute.xlu0 %2476
      %2478 = vrot.lane.b32.xlu0 %v2379, 32
      %v2479 = vpop.permute.xlu0 %2478
      %2480 = vrot.lane.b32.xlu0 %v2383, 32
      %v2481 = vpop.permute.xlu0 %2480
      %2482 = vrot.lane.b32.xlu0 %v2387, 32
      %v2483 = vpop.permute.xlu0 %2482
      %2484 = vrot.lane.b32.xlu0 %v2391, 32
      %v2485 = vpop.permute.xlu0 %2484
      %2486 = vrot.lane.b32.xlu0 %v2395, 32
      %v2487 = vpop.permute.xlu0 %2486
      %2488 = vrot.lane.b32.xlu0 %v2399, 32
      %v2489 = vpop.permute.xlu0 %2488
      %2490 = vrot.lane.b32.xlu0 %v2403, 32
      %v2491 = vpop.permute.xlu0 %2490
      %2492 = vrot.lane.b32.xlu0 %v2407, 32
      %v2493 = vpop.permute.xlu0 %2492
      %2494 = vrot.lane.b32.xlu0 %v2411, 32
      %v2495 = vpop.permute.xlu0 %2494
      %2496 = vrot.lane.b32.xlu0 %v2415, 32
      %v2497 = vpop.permute.xlu0 %2496
      %2498 = vrot.lane.b32.xlu0 %v2419, 32
      %v2499 = vpop.permute.xlu0 %2498
      %2500 = vrot.lane.b32.xlu0 %v2423, 32
      %v2501 = vpop.permute.xlu0 %2500
      %2502 = vrot.lane.b32.xlu0 %v2427, 32
      %v2503 = vpop.permute.xlu0 %2502
      %2504 = vrot.lane.b32.xlu0 %v2431, 32
      %v2505 = vpop.permute.xlu0 %2504
      %2506 = vrot.lane.b32.xlu0 %v2435, 32
      %v2507 = vpop.permute.xlu0 %2506
      %2508 = vrot.lane.b32.xlu0 %v2439, 32
      %v2509 = vpop.permute.xlu0 %2508
      %2510 = vrot.lane.b32.xlu0 %v2443, 32
      %v2511 = vpop.permute.xlu0 %2510
      %2512 = vrot.lane.b32.xlu0 %v2447, 32
      %v2513 = vpop.permute.xlu0 %2512
      %2514 = vrot.lane.b32.xlu0 %v2451, 32
      %v2515 = vpop.permute.xlu0 %2514
      %v2548 = vadd.f32 %v529, %v2453
      %v2549 = vadd.f32 %v532, %v2455
      %v2550 = vadd.f32 %v537, %v2457
      %v2551 = vadd.f32 %v540, %v2459
      %v2552 = vadd.f32 %v545, %v2461
      %v2553 = vadd.f32 %v548, %v2463
      %v2554 = vadd.f32 %v553, %v2465
      %v2555 = vadd.f32 %v556, %v2467
      %v2556 = vadd.f32 %v561, %v2469
      %v2557 = vadd.f32 %v564, %v2471
      %v2558 = vadd.f32 %v569, %v2473
      %v2559 = vadd.f32 %v572, %v2475
      %v2560 = vadd.f32 %v577, %v2477
      %v2561 = vadd.f32 %v580, %v2479
      %v2562 = vadd.f32 %v585, %v2481
      %v2563 = vadd.f32 %v588, %v2483
      %v2564 = vadd.f32 %v593, %v2485
      %v2565 = vadd.f32 %v596, %v2487
      %v2566 = vadd.f32 %v601, %v2489
      %v2567 = vadd.f32 %v604, %v2491
      %v2568 = vadd.f32 %v609, %v2493
      %v2569 = vadd.f32 %v612, %v2495
      %v2570 = vadd.f32 %v617, %v2497
      %v2571 = vadd.f32 %v620, %v2499
      %v2572 = vadd.f32 %v625, %v2501
      %v2573 = vadd.f32 %v628, %v2503
      %v2574 = vadd.f32 %v633, %v2505
      %v2575 = vadd.f32 %v636, %v2507
      %v2576 = vadd.f32 %v641, %v2509
      %v2577 = vadd.f32 %v644, %v2511
      %v2578 = vadd.f32 %v649, %v2513
      %v2579 = vadd.f32 %v652, %v2515
      %v2580 = vmul.f32 %v2548, 0.5
      %v2581 = vmul.f32 %v2549, 0.5
      %v2582 = vmul.f32 %v2550, 0.5
      %v2583 = vmul.f32 %v2551, 0.5
      %v2584 = vmul.f32 %v2552, 0.5
      %v2585 = vmul.f32 %v2553, 0.5
      %v2586 = vmul.f32 %v2554, 0.5
      %v2587 = vmul.f32 %v2555, 0.5
      %v2588 = vmul.f32 %v2556, 0.5
      %v2589 = vmul.f32 %v2557, 0.5
      %v2590 = vmul.f32 %v2558, 0.5
      %v2591 = vmul.f32 %v2559, 0.5
      %v2592 = vmul.f32 %v2560, 0.5
      %v2593 = vmul.f32 %v2561, 0.5
      %v2594 = vmul.f32 %v2562, 0.5
      %v2595 = vmul.f32 %v2563, 0.5
      %v2596 = vmul.f32 %v2564, 0.5
      %v2597 = vmul.f32 %v2565, 0.5
      %v2598 = vmul.f32 %v2566, 0.5
      %v2599 = vmul.f32 %v2567, 0.5
      %v2600 = vmul.f32 %v2568, 0.5
      %v2601 = vmul.f32 %v2569, 0.5
      %v2602 = vmul.f32 %v2570, 0.5
      %v2603 = vmul.f32 %v2571, 0.5
      %v2604 = vmul.f32 %v2572, 0.5
      %v2605 = vmul.f32 %v2573, 0.5
      %v2606 = vmul.f32 %v2574, 0.5
      %v2607 = vmul.f32 %v2575, 0.5
      %v2608 = vmul.f32 %v2576, 0.5
      %v2609 = vmul.f32 %v2577, 0.5
      %v2610 = vmul.f32 %v2578, 0.5
      %v2611 = vmul.f32 %v2579, 0.5
      %v2612 = vmul.f32 %v2548, 0.70710677
      %v2613 = vmul.f32 %v2549, 0.70710677
      %v2614 = vmul.f32 %v2550, 0.70710677
      %v2615 = vmul.f32 %v2551, 0.70710677
      %v2616 = vmul.f32 %v2552, 0.70710677
      %v2617 = vmul.f32 %v2553, 0.70710677
      %v2618 = vmul.f32 %v2554, 0.70710677
      %v2619 = vmul.f32 %v2555, 0.70710677
      %v2620 = vmul.f32 %v2556, 0.70710677
      %v2621 = vmul.f32 %v2557, 0.70710677
      %v2622 = vmul.f32 %v2558, 0.70710677
      %v2623 = vmul.f32 %v2559, 0.70710677
      %v2624 = vmul.f32 %v2560, 0.70710677
      %v2625 = vmul.f32 %v2561, 0.70710677
      %v2626 = vmul.f32 %v2562, 0.70710677
      %v2627 = vmul.f32 %v2563, 0.70710677
      %v2628 = vmul.f32 %v2564, 0.70710677
      %v2629 = vmul.f32 %v2565, 0.70710677
      %v2630 = vmul.f32 %v2566, 0.70710677
      %v2631 = vmul.f32 %v2567, 0.70710677
      %v2632 = vmul.f32 %v2568, 0.70710677
      %v2633 = vmul.f32 %v2569, 0.70710677
      %v2634 = vmul.f32 %v2570, 0.70710677
      %v2635 = vmul.f32 %v2571, 0.70710677
      %v2636 = vmul.f32 %v2572, 0.70710677
      %v2637 = vmul.f32 %v2573, 0.70710677
      %v2638 = vmul.f32 %v2574, 0.70710677
      %v2639 = vmul.f32 %v2575, 0.70710677
      %v2640 = vmul.f32 %v2576, 0.70710677
      %v2641 = vmul.f32 %v2577, 0.70710677
      %v2642 = vmul.f32 %v2578, 0.70710677
      %v2643 = vmul.f32 %v2579, 0.70710677
      %v2644 = verf.f32.pop %v2612
      %v2645 = verf.f32.pop %v2613
      %v2646 = verf.f32.pop %v2614
      %v2647 = verf.f32.pop %v2615
      %v2648 = verf.f32.pop %v2616
      %v2649 = verf.f32.pop %v2617
      %v2650 = verf.f32.pop %v2618
      %v2651 = verf.f32.pop %v2619
      %v2652 = verf.f32.pop %v2620
      %v2653 = verf.f32.pop %v2621
      %v2654 = verf.f32.pop %v2622
      %v2655 = verf.f32.pop %v2623
      %v2656 = verf.f32.pop %v2624
      %v2657 = verf.f32.pop %v2625
      %v2658 = verf.f32.pop %v2626
      %v2659 = verf.f32.pop %v2627
      %v2660 = verf.f32.pop %v2628
      %v2661 = verf.f32.pop %v2629
      %v2662 = verf.f32.pop %v2630
      %v2663 = verf.f32.pop %v2631
      %v2664 = verf.f32.pop %v2632
      %v2665 = verf.f32.pop %v2633
      %v2666 = verf.f32.pop %v2634
      %v2667 = verf.f32.pop %v2635
      %v2668 = verf.f32.pop %v2636
      %v2669 = verf.f32.pop %v2637
      %v2670 = verf.f32.pop %v2638
      %v2671 = verf.f32.pop %v2639
      %v2672 = verf.f32.pop %v2640
      %v2673 = verf.f32.pop %v2641
      %v2674 = verf.f32.pop %v2642
      %v2675 = verf.f32.pop %v2643
      %v2676 = vadd.f32 %v2644, 1.0
      %v2677 = vadd.f32 %v2645, 1.0
      %v2678 = vadd.f32 %v2646, 1.0
      %v2679 = vadd.f32 %v2647, 1.0
      %v2680 = vadd.f32 %v2648, 1.0
      %v2681 = vadd.f32 %v2649, 1.0
      %v2682 = vadd.f32 %v2650, 1.0
      %v2683 = vadd.f32 %v2651, 1.0
      %v2684 = vadd.f32 %v2652, 1.0
      %v2685 = vadd.f32 %v2653, 1.0
      %v2686 = vadd.f32 %v2654, 1.0
      %v2687 = vadd.f32 %v2655, 1.0
      %v2688 = vadd.f32 %v2656, 1.0
      %v2689 = vadd.f32 %v2657, 1.0
      %v2690 = vadd.f32 %v2658, 1.0
      %v2691 = vadd.f32 %v2659, 1.0
      %v2692 = vadd.f32 %v2660, 1.0
      %v2693 = vadd.f32 %v2661, 1.0
      %v2694 = vadd.f32 %v2662, 1.0
      %v2695 = vadd.f32 %v2663, 1.0
      %v2696 = vadd.f32 %v2664, 1.0
      %v2697 = vadd.f32 %v2665, 1.0
      %v2698 = vadd.f32 %v2666, 1.0
      %v2699 = vadd.f32 %v2667, 1.0
      %v2700 = vadd.f32 %v2668, 1.0
      %v2701 = vadd.f32 %v2669, 1.0
      %v2702 = vadd.f32 %v2670, 1.0
      %v2703 = vadd.f32 %v2671, 1.0
      %v2704 = vadd.f32 %v2672, 1.0
      %v2705 = vadd.f32 %v2673, 1.0
      %v2706 = vadd.f32 %v2674, 1.0
      %v2707 = vadd.f32 %v2675, 1.0
      %v2708 = vmul.f32 %v2580, %v2676
      %v2709 = vmul.f32 %v2581, %v2677
      %v2710 = vmul.f32 %v2582, %v2678
      %v2711 = vmul.f32 %v2583, %v2679
      %v2712 = vmul.f32 %v2584, %v2680
      %v2713 = vmul.f32 %v2585, %v2681
      %v2714 = vmul.f32 %v2586, %v2682
      %v2715 = vmul.f32 %v2587, %v2683
      %v2716 = vmul.f32 %v2588, %v2684
      %v2717 = vmul.f32 %v2589, %v2685
      %v2718 = vmul.f32 %v2590, %v2686
      %v2719 = vmul.f32 %v2591, %v2687
      %v2720 = vmul.f32 %v2592, %v2688
      %v2721 = vmul.f32 %v2593, %v2689
      %v2722 = vmul.f32 %v2594, %v2690
      %v2723 = vmul.f32 %v2595, %v2691
      %v2724 = vmul.f32 %v2596, %v2692
      %v2725 = vmul.f32 %v2597, %v2693
      %v2726 = vmul.f32 %v2598, %v2694
      %v2727 = vmul.f32 %v2599, %v2695
      %v2728 = vmul.f32 %v2600, %v2696
      %v2729 = vmul.f32 %v2601, %v2697
      %v2730 = vmul.f32 %v2602, %v2698
      %v2731 = vmul.f32 %v2603, %v2699
      %v2732 = vmul.f32 %v2604, %v2700
      %v2733 = vmul.f32 %v2605, %v2701
      %v2734 = vmul.f32 %v2606, %v2702
      %v2735 = vmul.f32 %v2607, %v2703
      %v2736 = vmul.f32 %v2608, %v2704
      %v2737 = vmul.f32 %v2609, %v2705
      %v2738 = vmul.f32 %v2610, %v2706
      %v2739 = vmul.f32 %v2611, %v2707
      %v2740 = vpack.c.bf16 %v2709, %v2708
      %v2741 = vpack.c.bf16 %v2711, %v2710
      %v2742 = vpack.c.bf16 %v2713, %v2712
      %v2743 = vpack.c.bf16 %v2715, %v2714
      %v2744 = vpack.c.bf16 %v2717, %v2716
      %v2745 = vpack.c.bf16 %v2719, %v2718
      %v2746 = vpack.c.bf16 %v2721, %v2720
      %v2747 = vpack.c.bf16 %v2723, %v2722
      %v2748 = vpack.c.bf16 %v2725, %v2724
      %v2749 = vpack.c.bf16 %v2727, %v2726
      %v2750 = vpack.c.bf16 %v2729, %v2728
      %v2751 = vpack.c.bf16 %v2731, %v2730
      %v2752 = vpack.c.bf16 %v2733, %v2732
      %v2753 = vpack.c.bf16 %v2735, %v2734
      %v2754 = vpack.c.bf16 %v2737, %v2736
      %v2755 = vpack.c.bf16 %v2739, %v2738
      %v2756 = vld [vmem:[%s6] sm:$0xf]
      %v2757 = vld [vmem:[%s6 + $0x4] sm:$0xf]
      %v2758 = vld [vmem:[%s6 + $0x8] sm:$0xf]
      %v2759 = vld [vmem:[%s6 + $0xc] sm:$0xf]
      %v2760 = vld [vmem:[%s7] sm:$0x1]
      %v2762 = vlaneseq
      %v2763 = vshrl.u32 %v2762, 7
      %v2764 = vsub.s32 0, %v2763
      %v2765 = vrot.slane %v2760, %v2764
      %2783 = vrot.lane.b32.xlu0 %v2740, 96
      %v2784 = vpop.permute.xlu0 %2783
      %2785 = vrot.lane.b32.xlu0 %v2741, 96
      %v2786 = vpop.permute.xlu0 %2785
      %2787 = vrot.lane.b32.xlu0 %v2742, 96
      %v2788 = vpop.permute.xlu0 %2787
      %2789 = vrot.lane.b32.xlu0 %v2743, 96
      %v2790 = vpop.permute.xlu0 %2789
      %2791 = vrot.lane.b32.xlu0 %v2744, 96
      %v2792 = vpop.permute.xlu0 %2791
      %2793 = vrot.lane.b32.xlu0 %v2745, 96
      %v2794 = vpop.permute.xlu0 %2793
      %2795 = vrot.lane.b32.xlu0 %v2746, 96
      %v2796 = vpop.permute.xlu0 %2795
      %2797 = vrot.lane.b32.xlu0 %v2747, 96
      %v2798 = vpop.permute.xlu0 %2797
      %2799 = vrot.lane.b32.xlu0 %v2748, 96
      %v2800 = vpop.permute.xlu0 %2799
      %2801 = vrot.lane.b32.xlu0 %v2749, 96
      %v2802 = vpop.permute.xlu0 %2801
      %2803 = vrot.lane.b32.xlu0 %v2750, 96
      %v2804 = vpop.permute.xlu0 %2803
      %2805 = vrot.lane.b32.xlu0 %v2751, 96
      %v2806 = vpop.permute.xlu0 %2805
      %2807 = vrot.lane.b32.xlu0 %v2752, 96
      %v2808 = vpop.permute.xlu0 %2807
      %2809 = vrot.lane.b32.xlu0 %v2753, 96
      %v2810 = vpop.permute.xlu0 %2809
      %2811 = vrot.lane.b32.xlu0 %v2754, 96
      %v2812 = vpop.permute.xlu0 %2811
      %2813 = vrot.lane.b32.xlu0 %v2755, 96
      %v2814 = vpop.permute.xlu0 %2813
      %v2819 = vunpack.c.l.b16 %v2756
      %v2820 = vunpack.c.l.b16 %v2757
      %v2821 = vunpack.c.l.b16 %v2758
      %v2822 = vunpack.c.l.b16 %v2759
      %v2823 = vpack.c.b16 %v2820, %v2819
      %v2824 = vpack.c.b16 %v2822, %v2821
      %v2828 = vsel %vm445, %v2784, 0
      %v2831 = vsel %vm445, %v2786, 0
      %v2834 = vsel %vm445, %v2788, 0
      %v2837 = vsel %vm445, %v2790, 0
      %v2840 = vsel %vm445, %v2792, 0
      %v2843 = vsel %vm445, %v2794, 0
      %v2846 = vsel %vm445, %v2796, 0
      %v2849 = vsel %vm445, %v2798, 0
      %v2852 = vsel %vm445, %v2800, 0
      %v2855 = vsel %vm445, %v2802, 0
      %v2858 = vsel %vm445, %v2804, 0
      %v2861 = vsel %vm445, %v2806, 0
      %v2864 = vsel %vm445, %v2808, 0
      %v2867 = vsel %vm445, %v2810, 0
      %v2870 = vsel %vm445, %v2812, 0
      %v2873 = vsel %vm445, %v2814, 0
      %2875 = vmatprep.subr.bf16.mxu0 0
      %2876 = vmatpush1.bf16.msra.mxu0 0
      %2877 = vmatprep.subr.bf16.mxu0 0
      %2878 = vmatpush1.bf16.msra.mxu0 0
      %2879 = vmatprep.subr.bf16.mxu0 0
      %2880 = vmatpush1.bf16.msra.mxu0 0
      %2881 = vmatprep.subr.bf16.mxu0 0
      %2882 = vmatpush1.bf16.msra.mxu0 0
      %2883 = vmatprep.subr.bf16.mxu0 0
      %2884 = vmatpush1.bf16.msra.mxu0 0
      %2885 = vmatprep.subr.bf16.mxu0 0
      %2886 = vmatpush1.bf16.msra.mxu0 0
      %2887 = vmatprep.subr.bf16.mxu0 0
      %2888 = vmatpush1.bf16.msra.mxu0 %v2824
      %2889 = vmatprep.subr.bf16.mxu0 0
      %2890 = vmatpush1.bf16.msra.mxu0 %v2823
      %2891 = vmatprep.subr.bf16.mxu0 0
      %2892 = vmatpush2.bf16.msra.mxu0 0
      %2893 = vmatprep.subr.bf16.mxu0 0
      %2894 = vmatpush2.bf16.msra.mxu0 0
      %2895 = vmatprep.subr.bf16.mxu0 0
      %2896 = vmatpush2.bf16.msra.mxu0 0
      %2897 = vmatprep.subr.bf16.mxu0 0
      %2898 = vmatpush2.bf16.msra.mxu0 0
      %2899 = vmatprep.subr.bf16.mxu0 0
      %2900 = vmatpush2.bf16.msra.mxu0 0
      %2901 = vmatprep.subr.bf16.mxu0 0
      %2902 = vmatpush2.bf16.msra.mxu0 0
      %2903 = vmatprep.subr.bf16.mxu0 0
      %2904 = vmatpush2.bf16.msra.mxu0 0
      %2905 = vmatprep.subr.bf16.mxu0 0
      %2906 = vmatpush2.bf16.msra.mxu0 0
      %2907 = vmatprep.mubr.bf16.mxu0 0
      %2908 = vmatmul.mubr.bf16.gmra.mxu0 %v2828
      %v2909 = vpop.f32.mrf.mxu0
      %v2910 = vadd.f32 %v2765, %v2909
      %v2911 = vpop.f32.mrf.mxu0
      %v2912 = vpop.f32.mrf.mxu0
      %v2913 = vadd.f32 %v2765, %v2912
      %v2914 = vpop.f32.mrf.mxu0
      %2915 = vmatprep.mubr.bf16.mxu0 0
      %2916 = vmatmul.mubr.bf16.gmra.mxu0 %v2831
      %v2917 = vpop.f32.mrf.mxu0
      %v2918 = vadd.f32 %v2765, %v2917
      %v2919 = vpop.f32.mrf.mxu0
      %v2920 = vpop.f32.mrf.mxu0
      %v2921 = vadd.f32 %v2765, %v2920
      %v2922 = vpop.f32.mrf.mxu0
      %2923 = vmatprep.mubr.bf16.mxu0 0
      %2924 = vmatmul.mubr.bf16.gmra.mxu0 %v2834
      %v2925 = vpop.f32.mrf.mxu0
      %v2926 = vadd.f32 %v2765, %v2925
      %v2927 = vpop.f32.mrf.mxu0
      %v2928 = vpop.f32.mrf.mxu0
      %v2929 = vadd.f32 %v2765, %v2928
      %v2930 = vpop.f32.mrf.mxu0
      %2931 = vmatprep.mubr.bf16.mxu0 0
      %2932 = vmatmul.mubr.bf16.gmra.mxu0 %v2837
      %v2933 = vpop.f32.mrf.mxu0
      %v2934 = vadd.f32 %v2765, %v2933
      %v2935 = vpop.f32.mrf.mxu0
      %v2936 = vpop.f32.mrf.mxu0
      %v2937 = vadd.f32 %v2765, %v2936
      %v2938 = vpop.f32.mrf.mxu0
      %2939 = vmatprep.mubr.bf16.mxu0 0
      %2940 = vmatmul.mubr.bf16.gmra.mxu0 %v2840
      %v2941 = vpop.f32.mrf.mxu0
      %v2942 = vadd.f32 %v2765, %v2941
      %v2943 = vpop.f32.mrf.mxu0
      %v2944 = vpop.f32.mrf.mxu0
      %v2945 = vadd.f32 %v2765, %v2944
      %v2946 = vpop.f32.mrf.mxu0
      %2947 = vmatprep.mubr.bf16.mxu0 0
      %2948 = vmatmul.mubr.bf16.gmra.mxu0 %v2843
      %v2949 = vpop.f32.mrf.mxu0
      %v2950 = vadd.f32 %v2765, %v2949
      %v2951 = vpop.f32.mrf.mxu0
      %v2952 = vpop.f32.mrf.mxu0
      %v2953 = vadd.f32 %v2765, %v2952
      %v2954 = vpop.f32.mrf.mxu0
      %2955 = vmatprep.mubr.bf16.mxu0 0
      %2956 = vmatmul.mubr.bf16.gmra.mxu0 %v2846
      %v2957 = vpop.f32.mrf.mxu0
      %v2958 = vadd.f32 %v2765, %v2957
      %v2959 = vpop.f32.mrf.mxu0
      %v2960 = vpop.f32.mrf.mxu0
      %v2961 = vadd.f32 %v2765, %v2960
      %v2962 = vpop.f32.mrf.mxu0
      %2963 = vmatprep.mubr.bf16.mxu0 0
      %2964 = vmatmul.mubr.bf16.gmra.mxu0 %v2849
      %v2965 = vpop.f32.mrf.mxu0
      %v2966 = vadd.f32 %v2765, %v2965
      %v2967 = vpop.f32.mrf.mxu0
      %v2968 = vpop.f32.mrf.mxu0
      %v2969 = vadd.f32 %v2765, %v2968
      %v2970 = vpop.f32.mrf.mxu0
      %2971 = vmatprep.mubr.bf16.mxu0 0
      %2972 = vmatmul.mubr.bf16.gmra.mxu0 %v2852
      %v2973 = vpop.f32.mrf.mxu0
      %v2974 = vadd.f32 %v2765, %v2973
      %v2975 = vpop.f32.mrf.mxu0
      %v2976 = vpop.f32.mrf.mxu0
      %v2977 = vadd.f32 %v2765, %v2976
      %v2978 = vpop.f32.mrf.mxu0
      %2979 = vmatprep.mubr.bf16.mxu0 0
      %2980 = vmatmul.mubr.bf16.gmra.mxu0 %v2855
      %v2981 = vpop.f32.mrf.mxu0
      %v2982 = vadd.f32 %v2765, %v2981
      %v2983 = vpop.f32.mrf.mxu0
      %v2984 = vpop.f32.mrf.mxu0
      %v2985 = vadd.f32 %v2765, %v2984
      %v2986 = vpop.f32.mrf.mxu0
      %2987 = vmatprep.mubr.bf16.mxu0 0
      %2988 = vmatmul.mubr.bf16.gmra.mxu0 %v2858
      %v2989 = vpop.f32.mrf.mxu0
      %v2990 = vadd.f32 %v2765, %v2989
      %v2991 = vpop.f32.mrf.mxu0
      %v2992 = vpop.f32.mrf.mxu0
      %v2993 = vadd.f32 %v2765, %v2992
      %v2994 = vpop.f32.mrf.mxu0
      %2995 = vmatprep.mubr.bf16.mxu0 0
      %2996 = vmatmul.mubr.bf16.gmra.mxu0 %v2861
      %v2997 = vpop.f32.mrf.mxu0
      %v2998 = vadd.f32 %v2765, %v2997
      %v2999 = vpop.f32.mrf.mxu0
      %v3000 = vpop.f32.mrf.mxu0
      %v3001 = vadd.f32 %v2765, %v3000
      %v3002 = vpop.f32.mrf.mxu0
      %3003 = vmatprep.mubr.bf16.mxu0 0
      %3004 = vmatmul.mubr.bf16.gmra.mxu0 %v2864
      %v3005 = vpop.f32.mrf.mxu0
      %v3006 = vadd.f32 %v2765, %v3005
      %v3007 = vpop.f32.mrf.mxu0
      %v3008 = vpop.f32.mrf.mxu0
      %v3009 = vadd.f32 %v2765, %v3008
      %v3010 = vpop.f32.mrf.mxu0
      %3011 = vmatprep.mubr.bf16.mxu0 0
      %3012 = vmatmul.mubr.bf16.gmra.mxu0 %v2867
      %v3013 = vpop.f32.mrf.mxu0
      %v3014 = vadd.f32 %v2765, %v3013
      %v3015 = vpop.f32.mrf.mxu0
      %v3016 = vpop.f32.mrf.mxu0
      %v3017 = vadd.f32 %v2765, %v3016
      %v3018 = vpop.f32.mrf.mxu0
      %3019 = vmatprep.mubr.bf16.mxu0 0
      %3020 = vmatmul.mubr.bf16.gmra.mxu0 %v2870
      %v3021 = vpop.f32.mrf.mxu0
      %v3022 = vadd.f32 %v2765, %v3021
      %v3023 = vpop.f32.mrf.mxu0
      %v3024 = vpop.f32.mrf.mxu0
      %v3025 = vadd.f32 %v2765, %v3024
      %v3026 = vpop.f32.mrf.mxu0
      %3027 = vmatprep.mubr.bf16.mxu0 0
      %3028 = vmatmul.mubr.bf16.gmra.mxu0 %v2873
      %v3029 = vpop.f32.mrf.mxu0
      %v3030 = vadd.f32 %v2765, %v3029
      %v3031 = vpop.f32.mrf.mxu0
      %v3032 = vpop.f32.mrf.mxu0
      %v3033 = vadd.f32 %v2765, %v3032
      %v3034 = vpop.f32.mrf.mxu0
      %3035 = vdwg.mxu0
      %3036 = vst.msk [vmem:[%s307] sm:$0xff] %vm445, %v2910
      %3037 = vst.msk [vmem:[%s307 + $0x8] sm:$0xff] %vm445, %v2913
      %3038 = vst.msk [vmem:[%s307 + $0x10] sm:$0xff] %vm445, %v2918
      %3039 = vst.msk [vmem:[%s307 + $0x18] sm:$0xff] %vm445, %v2921
      %3040 = vst.msk [vmem:[%s307 + $0x20] sm:$0xff] %vm445, %v2926
      %3041 = vst.msk [vmem:[%s307 + $0x28] sm:$0xff] %vm445, %v2929
      %3042 = vst.msk [vmem:[%s307 + $0x30] sm:$0xff] %vm445, %v2934
      %3043 = vst.msk [vmem:[%s307 + $0x38] sm:$0xff] %vm445, %v2937
      %3044 = vst.msk [vmem:[%s307 + $0x40] sm:$0xff] %vm445, %v2942
      %3045 = vst.msk [vmem:[%s307 + $0x48] sm:$0xff] %vm445, %v2945
      %3046 = vst.msk [vmem:[%s307 + $0x50] sm:$0xff] %vm445, %v2950
      %3047 = vst.msk [vmem:[%s307 + $0x58] sm:$0xff] %vm445, %v2953
      %3048 = vst.msk [vmem:[%s307 + $0x60] sm:$0xff] %vm445, %v2958
      %3049 = vst.msk [vmem:[%s307 + $0x68] sm:$0xff] %vm445, %v2961
      %3050 = vst.msk [vmem:[%s307 + $0x70] sm:$0xff] %vm445, %v2966
      %3051 = vst.msk [vmem:[%s307 + $0x78] sm:$0xff] %vm445, %v2969
      %3052 = vst.msk [vmem:[%s307 + $0x80] sm:$0xff] %vm445, %v2974
      %3053 = vst.msk [vmem:[%s307 + $0x88] sm:$0xff] %vm445, %v2977
      %3054 = vst.msk [vmem:[%s307 + $0x90] sm:$0xff] %vm445, %v2982
      %3055 = vst.msk [vmem:[%s307 + $0x98] sm:$0xff] %vm445, %v2985
      %3056 = vst.msk [vmem:[%s307 + $0xa0] sm:$0xff] %vm445, %v2990
      %3057 = vst.msk [vmem:[%s307 + $0xa8] sm:$0xff] %vm445, %v2993
      %3058 = vst.msk [vmem:[%s307 + $0xb0] sm:$0xff] %vm445, %v2998
      %3059 = vst.msk [vmem:[%s307 + $0xb8] sm:$0xff] %vm445, %v3001
      %3060 = vst.msk [vmem:[%s307 + $0xc0] sm:$0xff] %vm445, %v3006
      %3061 = vst.msk [vmem:[%s307 + $0xc8] sm:$0xff] %vm445, %v3009
      %3062 = vst.msk [vmem:[%s307 + $0xd0] sm:$0xff] %vm445, %v3014
      %3063 = vst.msk [vmem:[%s307 + $0xd8] sm:$0xff] %vm445, %v3017
      %3064 = vst.msk [vmem:[%s307 + $0xe0] sm:$0xff] %vm445, %v3022
      %3065 = vst.msk [vmem:[%s307 + $0xe8] sm:$0xff] %vm445, %v3025
      %3066 = vst.msk [vmem:[%s307 + $0xf0] sm:$0xff] %vm445, %v3030
      %3067 = vst.msk [vmem:[%s307 + $0xf8] sm:$0xff] %vm445, %v3033
      %s3068 = smul.u32 32, %s19
      %p3069 = scmp.lt.s32.totalorder %s3068, 63
      %s3070 = scalar_select %p3069, %s3068, 63
      %s3071 = smul.addr %s3070, 8
      %s3072 = scalar_lea.vmem %s8, %s3071
      // Predicated region
      $region53: #{tpu_custom_call.1} parent=51 // pred_check
        %p3073 = pneg %p210
      $region54: #{tpu_custom_call.1} parent=51 // pred_check_branch
        %3075 = sbr.rel (%p3073) target = $region56
      $region55: #{tpu_custom_call.1} parent=51 // pred_region
        %s3076 = smul.u32 32, %s19
      $region56: #{tpu_custom_call.1} parent=51 // pred_fallthru
        _
    $region52: #{tpu_custom_call.1} parent=5 // pred_fallthru
      _
    %p3077 = scmp.le.s32.totalorder 2, %s14
    // Predicated region
    $region57: #{tpu_custom_call.1} parent=5 // pred_check
      %p3078 = pneg %p3077
    $region58: #{tpu_custom_call.1} parent=5 // pred_check_branch
      %3080 = sbr.rel (%p3078) target = $region60
    $region59: #{tpu_custom_call.1} parent=5 // pred_region
      %s3081 = ssub.s32 %s14, 2
      // Predicated region
      $region61: #{tpu_custom_call.1} parent=59 // pred_check
        %p3082 = pneg %p216
      $region62: #{tpu_custom_call.1} parent=59 // pred_check_branch
        %3084 = sbr.rel (%p3082) target = $region64
      $region63: #{tpu_custom_call.1} parent=59 // pred_region
        %s3085 = smul.u32 32, %s20
        %p3086 = scmp.lt.s32.totalorder %s3085, 63
        %s3087 = scalar_select %p3086, %s3085, 63
        %s3088 = smul.addr %s3087, 8
        %s3089 = scalar_lea.vmem %s8, %s3088
      $region64: #{tpu_custom_call.1} parent=59 // pred_fallthru
        _
    $region60: #{tpu_custom_call.1} parent=5 // pred_fallthru
      _
  $region6: #{tpu_custom_call.1} parent=0 // loop_footer
    %s18 = sadd.s32 1, %s14
  $region7: #{tpu_custom_call.1} parent=0 // loop_footer_branch
    %13 = sbr.rel target = $region3
  $region8: #{tpu_custom_call.1} parent=0 // loop_exit
    _

</llo_original>
